<compile_context>
chip_gen: v7x
topology: tpu7x:2x2x1
jax: 0.10.0
libtpu: 0.0.40
codegen_flags: <defaults>
</compile_context>

<pallas_src>
import functools

import jax
import jax.numpy as jnp
from jax.experimental import pallas as pl
from jax.experimental.pallas import tpu as pltpu


# ----------------------------------------------------------------------------
# Pallas kernel: one grid step == one block of B samples, full FlowStep forward.
# ----------------------------------------------------------------------------
def flow_step_kernel(scal_ref,   # SMEM (12,) f32: fused actnorm+1x1 [W_eff(9) row-major, beta(3)]
                     x_ref,      # (B, 3*TV) f32   flattened NCHW block
                     abig_ref,   # (TV, TV) bf16   I_T (x) normalized adjacency
                     w2b_ref,    # (H*B, H*B) bf16 kron(w2, I_B)   (hidden-major rows)
                     w3b_ref,    # (4B, H*B) bf16  kron(w3, I_B)
                     cols_ref,   # (H*B, 4) f32    [w1 | b1 | b2 | b3(+2 folded, first 4B rows)]
                     out_ref,    # (B, 3*TV) f32
                     ld_ref):    # (B, TV) f32     per-sample, per-lane log(scale) partial sums
    f32 = jnp.float32
    bf16 = jnp.bfloat16

    b = x_ref.shape[0]
    tv = abig_ref.shape[0]
    h = w2b_ref.shape[0] // b

    # channel slices are full 128-aligned lane windows (no relayout)
    x0 = x_ref[:, 0 * tv:1 * tv]
    x1 = x_ref[:, 1 * tv:2 * tv]
    x2 = x_ref[:, 2 * tv:3 * tv]

    # --- ActNorm + invertible 1x1 conv fused: y_i = sum_j Weff[i,j]*x_j + beta_i
    # 9 scalar FMAs on the VPU (SMEM scalars) instead of a padded 3x3 MXU matmul.
    s = scal_ref
    y0 = s[0] * x0 + s[1] * x1 + s[2] * x2 + s[9]
    y1 = s[3] * x0 + s[4] * x1 + s[5] * x2 + s[10]
    y2 = s[6] * x0 + s[7] * x1 + s[8] * x2 + s[11]

    a_big = abig_ref[...]                    # (TV, TV) bf16

    # --- Affine coupling: z1 = channel 0, z2 = channels 1..2 ------------------
    # GCN layer 1:  (w1 (x) z1) @ A == w1 (x) (z1 @ A)  -> contract with A first,
    # then the rank-1 hidden expansion is pure VPU broadcast work (no K=8 matmul).
    za = jnp.dot(y0.astype(bf16), a_big, preferred_element_type=f32)          # (B, TV)
    za_rep = jnp.tile(za, (h, 1))                                             # (H*B, TV), row g*B+b = za[b]
    h1 = jnp.maximum(cols_ref[:, 0:1] * za_rep + cols_ref[:, 1:2], 0.0)       # relu(w1*za + b1)

    # GCN layer 2: kron(w2, I_B) mixes each sample's hidden dim in one matmul.
    h2 = jnp.dot(w2b_ref[...], h1.astype(bf16), preferred_element_type=f32)   # (H*B, TV)
    h2 = jnp.dot(h2.astype(bf16), a_big, preferred_element_type=f32)
    h2 = jnp.maximum(h2 + cols_ref[:, 2:3], 0.0)

    # output projection -> rows [shift_c0 | shift_c1 | scale_c0 | scale_c1] (4B, TV)
    ho = jnp.dot(w3b_ref[...], h2.astype(bf16), preferred_element_type=f32)
    ho = ho + cols_ref[0:4 * b, 3:4]          # b3 with '+2.0' already folded into scale rows

    shift0 = ho[0 * b:1 * b]
    shift1 = ho[1 * b:2 * b]
    u0 = ho[2 * b:3 * b]
    u1 = ho[3 * b:4 * b]

    # stable log-sigmoid: log σ(u) = min(u,0) - log(1 + exp(-|u|))   (EUP work)
    ls0 = jnp.minimum(u0, 0.0) - jnp.log(1.0 + jnp.exp(-jnp.abs(u0)))
    ls1 = jnp.minimum(u1, 0.0) - jnp.log(1.0 + jnp.exp(-jnp.abs(u1)))
    scale0 = jnp.exp(ls0)                     # == sigmoid(u0)
    scale1 = jnp.exp(ls1)

    z2n0 = (y1 + shift0) * scale0
    z2n1 = (y2 + shift1) * scale1

    # single lane-dense (B, 3*TV) store; channels stay adjacent 128-lane slabs
    out_ref[...] = jnp.concatenate([y0, z2n0, z2n1], axis=1)

    # lane-dense logdet slab (unmasked vst); reduced + constant term in wrapper
    ld_ref[...] = ls0 + ls1


# ----------------------------------------------------------------------------
# Wrapper
# ----------------------------------------------------------------------------
@functools.partial(jax.jit, static_argnames=("block_b",))
def flow_step_forward(x_nchw, params, logdet=None, block_b=None):
    """x_nchw: [N, C, T, V] float32.  Returns (out [N,C,T,V], logdet [N])."""
    n, c, t, v = x_nchw.shape
    tv = t * v
    assert c == 3, "FlowStep splits 3 coordinate channels into 1 + 2"
    assert tv % 128 == 0, "flattened T*V must be lane-aligned (pad in caller)"
    (bias_act, logs_act, w_inv, logs_inv, a_big, w1, b1, w2, b2, w3, b3) = params
    h = w2.shape[0]

    b_blk = n if block_b is None else min(block_b, n)
    assert b_blk % 8 == 0, "per-step batch block must be a multiple of 8 (sublane rule)"
    assert n % b_blk == 0, "batch must be a multiple of the per-step block"
    grid_n = n // b_blk

    # ---- host-side parameter packing ----------------------------------------
    # Fuse ActNorm into the invertible 1x1 conv:  y = W_eff @ x + beta
    s_act = jnp.exp(logs_act[:, 0])
    w_eff = w_inv * s_act[None, :]
    beta = w_inv @ (s_act * bias_act[:, 0])
    scal = jnp.concatenate([w_eff.reshape(-1), beta]).astype(jnp.float32)     # (12,)

    # Hidden-major (row = g*B + b) block-diagonal coupling weights.
    eye_b = jnp.eye(b_blk, dtype=jnp.float32)
    w2_big = jnp.kron(w2, eye_b).astype(jnp.bfloat16)                         # (H*B, H*B)
    w3_big = jnp.kron(w3, eye_b).astype(jnp.bfloat16)                         # (4B, H*B)

    # columns: [w1 | b1 | b2 | b3(+2 on scale rows, first 4B rows)]
    b3_mod = b3.at[2:4, 0].add(2.0)           # fold the sigmoid '+2.0' shift into the bias
    cols = jnp.zeros((h * b_blk, 4), jnp.float32)
    cols = cols.at[:, 0].set(jnp.repeat(w1[:, 0], b_blk))
    cols = cols.at[:, 1].set(jnp.repeat(b1[:, 0], b_blk))
    cols = cols.at[:, 2].set(jnp.repeat(b2[:, 0], b_blk))
    cols = cols.at[:4 * b_blk, 3].set(jnp.repeat(b3_mod[:, 0], b_blk))

    a_bf = a_big.astype(jnp.bfloat16)

    # No transposes: channels become adjacent 128-aligned lane slabs (free reshape).
    x_flat = x_nchw.reshape(n, c * tv).astype(jnp.float32)

    def rep_spec(p):
        zeros = (0,) * p.ndim
        return pl.BlockSpec(p.shape, lambda i, _z=zeros: _z)

    bh = b_blk * h
    flops_blk = 2 * tv * (b_blk * tv + bh * bh + bh * tv + 4 * b_blk * bh)    # MXU
    flops_blk += 40 * b_blk * tv + 8 * bh * tv                                # VPU elementwise
    cost = pl.CostEstimate(
        flops=int(grid_n * flops_blk),
        transcendentals=int(grid_n * 6 * b_blk * tv),
        bytes_accessed=int(2 * n * c * tv * 4 + n * tv * 4
                           + (tv * tv + bh * bh + 4 * b_blk * bh) * 2
                           + bh * 4 * 4 + 12 * 4),
    )

    out_flat, ld_slab = pl.pallas_call(
        flow_step_kernel,
        out_shape=(jax.ShapeDtypeStruct((n, c * tv), jnp.float32),
                   jax.ShapeDtypeStruct((n, tv), jnp.float32)),
        grid_spec=pltpu.PrefetchScalarGridSpec(
            num_scalar_prefetch=0,
            grid=(grid_n,),
            in_specs=[
                pl.BlockSpec(memory_space=pltpu.MemorySpace.SMEM),            # fused scalars
                pl.BlockSpec((b_blk, c * tv), lambda i: (i, 0)),              # x block
                rep_spec(a_bf), rep_spec(w2_big), rep_spec(w3_big), rep_spec(cols),
            ],
            out_specs=[pl.BlockSpec((b_blk, c * tv), lambda i: (i, 0)),
                       pl.BlockSpec((b_blk, tv), lambda i: (i, 0))],
        ),
        # grid is (1,) by default; for multi-step grids on v7x CORE_PARALLEL /
        # pl.core_map would split the two sample-blocks across the two TCs.
        compiler_params=pltpu.CompilerParams(dimension_semantics=("parallel",)),
        cost_estimate=cost,
    )(scal, x_flat, a_bf, w2_big, w3_big, cols)

    out = out_flat.reshape(n, c, t, v)
    ld = jnp.sum(ld_slab, axis=1) + tv * (jnp.sum(logs_act) + jnp.sum(logs_inv))
    if logdet is not None:
        ld = ld + logdet
    return out, ld


# ----------------------------------------------------------------------------
# Deterministic parameter construction (synthetic, shapes from module __init__)
# ----------------------------------------------------------------------------
def make_params(key, num_in_channels=3, hidden_size=32, t=16, v=8):
    c, hh = num_in_channels, hidden_size
    ks = jax.random.split(key, 12)

    # ActNorm
    bias_act = 0.1 * jax.random.normal(ks[0], (c, 1), jnp.float32)
    logs_act = 0.1 * jax.random.normal(ks[1], (c, 1), jnp.float32)

    # InvertibleConv1x1, LU-decomposed:  W = P @ L @ (U + diag(sign_s * exp(log_s)))
    l_mat = jnp.tril(0.1 * jax.random.normal(ks[2], (c, c), jnp.float32), -1) + jnp.eye(c)
    u_mat = jnp.triu(0.1 * jax.random.normal(ks[3], (c, c), jnp.float32), 1)
    sign_s = jnp.sign(jax.random.normal(ks[4], (c,), jnp.float32))
    sign_s = jnp.where(sign_s == 0, 1.0, sign_s)
    log_s = 0.1 * jax.random.normal(ks[5], (c,), jnp.float32)
    p_mat = jnp.eye(c)[jnp.array([2, 0, 1])]
    w_inv = p_mat @ l_mat @ (u_mat + jnp.diag(sign_s * jnp.exp(log_s)))
    logs_inv = log_s.reshape(c, 1)

    # Coupling net (GCN approximation of the st-gcn block) — nonzero biases so
    # the kernel's bias-packing path is actually exercised by the check.
    w1 = 0.3 * jax.random.normal(ks[6], (hh, 1), jnp.float32)
    b1 = 0.05 * jax.random.normal(ks[9], (hh, 1), jnp.float32)
    w2 = (1.0 / jnp.sqrt(hh)) * jax.random.normal(ks[7], (hh, hh), jnp.float32)
    b2 = 0.05 * jax.random.normal(ks[10], (hh, 1), jnp.float32)
    w3 = 0.1 * jax.random.normal(ks[8], (2 * (c - c // 2), hh), jnp.float32)
    b3 = 0.05 * jax.random.normal(ks[11], (2 * (c - c // 2), 1), jnp.float32)

    # Chain-graph adjacency over joints ('locomotion' skeleton approximation),
    # symmetric normalization, block-diagonal over time: A_big = I_T (x) A_hat.
    a = jnp.zeros((v, v), jnp.float32)
    idx = jnp.arange(v - 1)
    a = a.at[idx, idx + 1].set(1.0).at[idx + 1, idx].set(1.0)
    a = a + jnp.eye(v)
    dinv = 1.0 / jnp.sqrt(jnp.sum(a, axis=1))
    a_hat = a * dinv[:, None] * dinv[None, :]
    a_big = jnp.kron(jnp.eye(t, dtype=jnp.float32), a_hat)          # (T*V, T*V)

    return (bias_act, logs_act, w_inv, logs_inv, a_big,
            w1, b1, w2, b2, w3, b3)


# ----------------------------------------------------------------------------
# Plain-JAX reference (same math, f32) for a sanity check
# ----------------------------------------------------------------------------
def flow_step_reference(x_nchw, params):
    n, c, t, v = x_nchw.shape
    tv = t * v
    (bact, logs_act, w_inv, logs_inv, a_big, w1, b1, w2, b2, w3, b3) = params
    x2 = x_nchw.reshape(n, c, tv).astype(jnp.float32)

    y = (x2 + bact[None]) * jnp.exp(logs_act)[None]
    y = jnp.einsum('ij,njp->nip', w_inv, y)
    z1, z2 = y[:, 0:1], y[:, 1:3]

    h1 = w1[None] * z1                                           # (N, H, TV)
    h1 = jnp.maximum(jnp.einsum('nhp,pq->nhq', h1, a_big) + b1[None], 0.0)
    h2 = jnp.einsum('hg,ngp->nhp', w2, h1)
    h2 = jnp.maximum(jnp.einsum('nhp,pq->nhq', h2, a_big) + b2[None], 0.0)
    ho = jnp.einsum('oh,nhp->nop', w3, h2) + b3[None]
    shift, scale = ho[:, 0:2], jax.nn.sigmoid(ho[:, 2:4] + 2.0)
    z2n = (z2 + shift) * scale

    out = jnp.concatenate([z1, z2n], axis=1).reshape(n, c, t, v)
    ld = (jnp.sum(jnp.log(scale), axis=(1, 2))
          + tv * (jnp.sum(logs_act) + jnp.sum(logs_inv)))
    return out, ld


if __name__ == "__main__":
    N, C, T, V = 8, 3, 16, 8          # NCHW input: [batch, coords, time, joints]
    HIDDEN = 32

    key = jax.random.PRNGKey(0)
    kx, kp = jax.random.split(key)
    x = jax.random.normal(kx, (N, C, T, V), jnp.float32)
    params = make_params(kp, num_in_channels=C, hidden_size=HIDDEN, t=T, v=V)

    # block_b defaults to N -> grid=(1,): the whole batch in one step.
    out, logdet = flow_step_forward(x, params,
                                    logdet=jnp.zeros((N,), jnp.float32))
    out = jax.block_until_ready(out)
    logdet = jax.block_until_ready(logdet)

    ref_out, ref_ld = flow_step_reference(x, params)
    max_err_out = float(jnp.max(jnp.abs(out - ref_out)))
    max_err_ld = float(jnp.max(jnp.abs(logdet - ref_ld)))
    ld_scale = float(jnp.max(jnp.abs(ref_ld))) + 1.0
    assert out.shape == (N, C, T, V) and logdet.shape == (N,)
    # bf16 matmul operands: output error stays well inside 2e-2; logdet sums
    # log(scale) over 2*T*V elements, so allow a small relative slack there.
    assert max_err_out < 2e-2, f"output mismatch: {max_err_out}"
    assert max_err_ld < 2e-2 + 3e-3 * ld_scale, f"logdet mismatch: {max_err_ld}"

    print("KERNEL_OK")
</pallas_src>

<mosaic_0001>
module attributes {stable_mosaic.version = 11 : i64} {
  func.func @flow_step_kernel(%arg0: i32, %arg1: memref<12xf32, #tpu.memory_space<smem>>, %arg2: memref<8x384xf32, #tpu.memory_space<vmem>>, %arg3: memref<128x128xbf16, #tpu.memory_space<vmem>>, %arg4: memref<256x256xbf16, #tpu.memory_space<vmem>>, %arg5: memref<32x256xbf16, #tpu.memory_space<vmem>>, %arg6: memref<256x4xf32, #tpu.memory_space<vmem>>, %arg7: memref<8x384xf32, #tpu.memory_space<vmem>>, %arg8: memref<8x128xf32, #tpu.memory_space<vmem>>) attributes {dimension_semantics = [#tpu.dimension_semantics<parallel>], iteration_bounds = array<i64: 1>, scalar_prefetch = 0 : i64, scratch_operands = 0 : i64, tpu.core_type = #tpu.core_type<tc>, window_params = [{transform_indices = @transform_0, window_bounds = array<i64: 12>}, {transform_indices = @transform_1, window_bounds = array<i64: 8, 384>}, {pipeline_mode = #tpu.pipeline_mode<synchronous>, transform_indices = @transform_2, window_bounds = array<i64: 128, 128>}, {pipeline_mode = #tpu.pipeline_mode<synchronous>, transform_indices = @transform_3, window_bounds = array<i64: 256, 256>}, {pipeline_mode = #tpu.pipeline_mode<synchronous>, transform_indices = @transform_4, window_bounds = array<i64: 32, 256>}, {pipeline_mode = #tpu.pipeline_mode<synchronous>, transform_indices = @transform_5, window_bounds = array<i64: 256, 4>}, {transform_indices = @transform_6, window_bounds = array<i64: 8, 384>}, {transform_indices = @transform_7, window_bounds = array<i64: 8, 128>}]} {
    %c0 = arith.constant 0 : index
    %c0_0 = arith.constant 0 : index
    %0 = vector.load %arg2[%c0, %c0_0] : memref<8x384xf32, #tpu.memory_space<vmem>>, vector<8x128xf32>
    %c0_1 = arith.constant 0 : index
    %c128 = arith.constant 128 : index
    %1 = vector.load %arg2[%c0_1, %c128] : memref<8x384xf32, #tpu.memory_space<vmem>>, vector<8x128xf32>
    %c0_2 = arith.constant 0 : index
    %c256 = arith.constant 256 : index
    %2 = vector.load %arg2[%c0_2, %c256] : memref<8x384xf32, #tpu.memory_space<vmem>>, vector<8x128xf32>
    %c0_3 = arith.constant 0 : index
    %3 = memref.load %arg1[%c0_3] : memref<12xf32, #tpu.memory_space<smem>>
    %4 = vector.broadcast %3 : f32 to vector<8x128xf32>
    %5 = arith.mulf %4, %0 : vector<8x128xf32>
    %c1 = arith.constant 1 : index
    %6 = memref.load %arg1[%c1] : memref<12xf32, #tpu.memory_space<smem>>
    %7 = vector.broadcast %6 : f32 to vector<8x128xf32>
    %8 = arith.mulf %7, %1 : vector<8x128xf32>
    %9 = arith.addf %5, %8 : vector<8x128xf32>
    %c2 = arith.constant 2 : index
    %10 = memref.load %arg1[%c2] : memref<12xf32, #tpu.memory_space<smem>>
    %11 = vector.broadcast %10 : f32 to vector<8x128xf32>
    %12 = arith.mulf %11, %2 : vector<8x128xf32>
    %13 = arith.addf %9, %12 : vector<8x128xf32>
    %c9 = arith.constant 9 : index
    %14 = memref.load %arg1[%c9] : memref<12xf32, #tpu.memory_space<smem>>
    %15 = vector.broadcast %14 : f32 to vector<8x128xf32>
    %16 = arith.addf %13, %15 : vector<8x128xf32>
    %c3 = arith.constant 3 : index
    %17 = memref.load %arg1[%c3] : memref<12xf32, #tpu.memory_space<smem>>
    %18 = vector.broadcast %17 : f32 to vector<8x128xf32>
    %19 = arith.mulf %18, %0 : vector<8x128xf32>
    %c4 = arith.constant 4 : index
    %20 = memref.load %arg1[%c4] : memref<12xf32, #tpu.memory_space<smem>>
    %21 = vector.broadcast %20 : f32 to vector<8x128xf32>
    %22 = arith.mulf %21, %1 : vector<8x128xf32>
    %23 = arith.addf %19, %22 : vector<8x128xf32>
    %c5 = arith.constant 5 : index
    %24 = memref.load %arg1[%c5] : memref<12xf32, #tpu.memory_space<smem>>
    %25 = vector.broadcast %24 : f32 to vector<8x128xf32>
    %26 = arith.mulf %25, %2 : vector<8x128xf32>
    %27 = arith.addf %23, %26 : vector<8x128xf32>
    %c10 = arith.constant 10 : index
    %28 = memref.load %arg1[%c10] : memref<12xf32, #tpu.memory_space<smem>>
    %29 = vector.broadcast %28 : f32 to vector<8x128xf32>
    %30 = arith.addf %27, %29 : vector<8x128xf32>
    %c6 = arith.constant 6 : index
    %31 = memref.load %arg1[%c6] : memref<12xf32, #tpu.memory_space<smem>>
    %32 = vector.broadcast %31 : f32 to vector<8x128xf32>
    %33 = arith.mulf %32, %0 : vector<8x128xf32>
    %c7 = arith.constant 7 : index
    %34 = memref.load %arg1[%c7] : memref<12xf32, #tpu.memory_space<smem>>
    %35 = vector.broadcast %34 : f32 to vector<8x128xf32>
    %36 = arith.mulf %35, %1 : vector<8x128xf32>
    %37 = arith.addf %33, %36 : vector<8x128xf32>
    %c8 = arith.constant 8 : index
    %38 = memref.load %arg1[%c8] : memref<12xf32, #tpu.memory_space<smem>>
    %39 = vector.broadcast %38 : f32 to vector<8x128xf32>
    %40 = arith.mulf %39, %2 : vector<8x128xf32>
    %41 = arith.addf %37, %40 : vector<8x128xf32>
    %c11 = arith.constant 11 : index
    %42 = memref.load %arg1[%c11] : memref<12xf32, #tpu.memory_space<smem>>
    %43 = vector.broadcast %42 : f32 to vector<8x128xf32>
    %44 = arith.addf %41, %43 : vector<8x128xf32>
    %c0_4 = arith.constant 0 : index
    %c0_5 = arith.constant 0 : index
    %45 = vector.load %arg3[%c0_4, %c0_5] : memref<128x128xbf16, #tpu.memory_space<vmem>>, vector<128x128xbf16>
    %46 = arith.truncf %16 : vector<8x128xf32> to vector<8x128xbf16>
    %cst = arith.constant dense<0.000000e+00> : vector<8x128xf32>
    %47 = tpu.matmul %46, %45, %cst {dimension_numbers = #tpu.dot_dimension_numbers<[1], [0], [0], [1], [0, 0, 1, 1], [], []>} : vector<8x128xbf16>, vector<128x128xbf16>, vector<8x128xf32> -> vector<8x128xf32>
    %48 = tpu.concatenate %47, %47, %47, %47, %47, %47, %47, %47, %47, %47, %47, %47, %47, %47, %47, %47, %47, %47, %47, %47, %47, %47, %47, %47, %47, %47, %47, %47, %47, %47, %47, %47 in 0 : vector<8x128xf32>, vector<8x128xf32>, vector<8x128xf32>, vector<8x128xf32>, vector<8x128xf32>, vector<8x128xf32>, vector<8x128xf32>, vector<8x128xf32>, vector<8x128xf32>, vector<8x128xf32>, vector<8x128xf32>, vector<8x128xf32>, vector<8x128xf32>, vector<8x128xf32>, vector<8x128xf32>, vector<8x128xf32>, vector<8x128xf32>, vector<8x128xf32>, vector<8x128xf32>, vector<8x128xf32>, vector<8x128xf32>, vector<8x128xf32>, vector<8x128xf32>, vector<8x128xf32>, vector<8x128xf32>, vector<8x128xf32>, vector<8x128xf32>, vector<8x128xf32>, vector<8x128xf32>, vector<8x128xf32>, vector<8x128xf32>, vector<8x128xf32> -> vector<256x128xf32>
    %c0_6 = arith.constant 0 : index
    %c0_7 = arith.constant 0 : index
    %49 = vector.load %arg6[%c0_6, %c0_7] : memref<256x4xf32, #tpu.memory_space<vmem>>, vector<256x1xf32>
    %50 = vector.broadcast %49 : vector<256x1xf32> to vector<256x128xf32>
    %51 = arith.mulf %50, %48 : vector<256x128xf32>
    %c0_8 = arith.constant 0 : index
    %c1_9 = arith.constant 1 : index
    %52 = vector.load %arg6[%c0_8, %c1_9] : memref<256x4xf32, #tpu.memory_space<vmem>>, vector<256x1xf32>
    %53 = vector.broadcast %52 : vector<256x1xf32> to vector<256x128xf32>
    %54 = arith.addf %51, %53 : vector<256x128xf32>
    %cst_10 = arith.constant 0.000000e+00 : f32
    %55 = vector.broadcast %cst_10 : f32 to vector<256x128xf32>
    %56 = arith.maximumf %54, %55 : vector<256x128xf32>
    %c0_11 = arith.constant 0 : index
    %c0_12 = arith.constant 0 : index
    %57 = vector.load %arg4[%c0_11, %c0_12] : memref<256x256xbf16, #tpu.memory_space<vmem>>, vector<256x256xbf16>
    %58 = arith.truncf %56 : vector<256x128xf32> to vector<256x128xbf16>
    %cst_13 = arith.constant dense<0.000000e+00> : vector<256x128xf32>
    %59 = tpu.matmul %57, %58, %cst_13 {dimension_numbers = #tpu.dot_dimension_numbers<[1], [0], [0], [1], [0, 0, 1, 1], [], []>} : vector<256x256xbf16>, vector<256x128xbf16>, vector<256x128xf32> -> vector<256x128xf32>
    %60 = arith.truncf %59 : vector<256x128xf32> to vector<256x128xbf16>
    %cst_14 = arith.constant dense<0.000000e+00> : vector<256x128xf32>
    %61 = tpu.matmul %60, %45, %cst_14 {dimension_numbers = #tpu.dot_dimension_numbers<[1], [0], [0], [1], [0, 0, 1, 1], [], []>} : vector<256x128xbf16>, vector<128x128xbf16>, vector<256x128xf32> -> vector<256x128xf32>
    %c0_15 = arith.constant 0 : index
    %c2_16 = arith.constant 2 : index
    %62 = vector.load %arg6[%c0_15, %c2_16] : memref<256x4xf32, #tpu.memory_space<vmem>>, vector<256x1xf32>
    %63 = vector.broadcast %62 : vector<256x1xf32> to vector<256x128xf32>
    %64 = arith.addf %61, %63 : vector<256x128xf32>
    %cst_17 = arith.constant 0.000000e+00 : f32
    %65 = vector.broadcast %cst_17 : f32 to vector<256x128xf32>
    %66 = arith.maximumf %64, %65 : vector<256x128xf32>
    %c0_18 = arith.constant 0 : index
    %c0_19 = arith.constant 0 : index
    %67 = vector.load %arg5[%c0_18, %c0_19] : memref<32x256xbf16, #tpu.memory_space<vmem>>, vector<32x256xbf16>
    %68 = arith.truncf %66 : vector<256x128xf32> to vector<256x128xbf16>
    %cst_20 = arith.constant dense<0.000000e+00> : vector<32x128xf32>
    %69 = tpu.matmul %67, %68, %cst_20 {dimension_numbers = #tpu.dot_dimension_numbers<[1], [0], [0], [1], [0, 0, 1, 1], [], []>} : vector<32x256xbf16>, vector<256x128xbf16>, vector<32x128xf32> -> vector<32x128xf32>
    %c0_21 = arith.constant 0 : index
    %c3_22 = arith.constant 3 : index
    %70 = vector.load %arg6[%c0_21, %c3_22] : memref<256x4xf32, #tpu.memory_space<vmem>>, vector<32x1xf32>
    %71 = vector.broadcast %70 : vector<32x1xf32> to vector<32x128xf32>
    %72 = arith.addf %69, %71 : vector<32x128xf32>
    %73 = vector.extract_strided_slice %72 {offsets = [0, 0], sizes = [8, 128], strides = [1, 1]} : vector<32x128xf32> to vector<8x128xf32>
    %74 = vector.extract_strided_slice %72 {offsets = [8, 0], sizes = [8, 128], strides = [1, 1]} : vector<32x128xf32> to vector<8x128xf32>
    %75 = vector.extract_strided_slice %72 {offsets = [16, 0], sizes = [8, 128], strides = [1, 1]} : vector<32x128xf32> to vector<8x128xf32>
    %76 = vector.extract_strided_slice %72 {offsets = [24, 0], sizes = [8, 128], strides = [1, 1]} : vector<32x128xf32> to vector<8x128xf32>
    %cst_23 = arith.constant 0.000000e+00 : f32
    %77 = vector.broadcast %cst_23 : f32 to vector<8x128xf32>
    %78 = arith.minimumf %75, %77 : vector<8x128xf32>
    %79 = math.absf %75 : vector<8x128xf32>
    %cst_24 = arith.constant 0.000000e+00 : f32
    %80 = vector.broadcast %cst_24 : f32 to vector<8x128xf32>
    %81 = arith.subf %80, %79 : vector<8x128xf32>
    %82 = math.exp %81 : vector<8x128xf32>
    %cst_25 = arith.constant 1.000000e+00 : f32
    %83 = vector.broadcast %cst_25 : f32 to vector<8x128xf32>
    %84 = arith.addf %83, %82 : vector<8x128xf32>
    %85 = math.log %84 : vector<8x128xf32>
    %86 = arith.subf %78, %85 : vector<8x128xf32>
    %cst_26 = arith.constant 0.000000e+00 : f32
    %87 = vector.broadcast %cst_26 : f32 to vector<8x128xf32>
    %88 = arith.minimumf %76, %87 : vector<8x128xf32>
    %89 = math.absf %76 : vector<8x128xf32>
    %cst_27 = arith.constant 0.000000e+00 : f32
    %90 = vector.broadcast %cst_27 : f32 to vector<8x128xf32>
    %91 = arith.subf %90, %89 : vector<8x128xf32>
    %92 = math.exp %91 : vector<8x128xf32>
    %cst_28 = arith.constant 1.000000e+00 : f32
    %93 = vector.broadcast %cst_28 : f32 to vector<8x128xf32>
    %94 = arith.addf %93, %92 : vector<8x128xf32>
    %95 = math.log %94 : vector<8x128xf32>
    %96 = arith.subf %88, %95 : vector<8x128xf32>
    %97 = math.exp %86 : vector<8x128xf32>
    %98 = math.exp %96 : vector<8x128xf32>
    %99 = arith.addf %30, %73 : vector<8x128xf32>
    %100 = arith.mulf %99, %97 : vector<8x128xf32>
    %101 = arith.addf %44, %74 : vector<8x128xf32>
    %102 = arith.mulf %101, %98 : vector<8x128xf32>
    %103 = tpu.concatenate %16, %100, %102 in 1 : vector<8x128xf32>, vector<8x128xf32>, vector<8x128xf32> -> vector<8x384xf32>
    %c0_29 = arith.constant 0 : index
    %c0_30 = arith.constant 0 : index
    %104 = vector.load %arg7[%c0_29, %c0_30] : memref<8x384xf32, #tpu.memory_space<vmem>>, vector<8x384xf32>
    tpu.vector_store %arg7[%c0_29, %c0_30], %103 {strides = array<i32>} : memref<8x384xf32, #tpu.memory_space<vmem>>, vector<8x384xf32>,
    %105 = arith.addf %86, %96 : vector<8x128xf32>
    %c0_31 = arith.constant 0 : index
    %c0_32 = arith.constant 0 : index
    %106 = vector.load %arg8[%c0_31, %c0_32] : memref<8x128xf32, #tpu.memory_space<vmem>>, vector<8x128xf32>
    tpu.vector_store %arg8[%c0_31, %c0_32], %105 {strides = array<i32>} : memref<8x128xf32, #tpu.memory_space<vmem>>, vector<8x128xf32>,
    return
  }
  func.func @transform_0(%arg0: i32) -> i32 {
    %c0_i32 = arith.constant 0 : i32
    %c0_i32_0 = arith.constant 0 : i32
    return %c0_i32 : i32
  }
  func.func @transform_1(%arg0: i32) -> (i32, i32) {
    %c0_i32 = arith.constant 0 : i32
    %c0_i32_0 = arith.constant 0 : i32
    return %arg0, %c0_i32 : i32, i32
  }
  func.func @transform_2(%arg0: i32) -> (i32, i32) {
    %c0_i32 = arith.constant 0 : i32
    %c0_i32_0 = arith.constant 0 : i32
    %c0_i32_1 = arith.constant 0 : i32
    return %c0_i32, %c0_i32_0 : i32, i32
  }
  func.func @transform_3(%arg0: i32) -> (i32, i32) {
    %c0_i32 = arith.constant 0 : i32
    %c0_i32_0 = arith.constant 0 : i32
    %c0_i32_1 = arith.constant 0 : i32
    return %c0_i32, %c0_i32_0 : i32, i32
  }
  func.func @transform_4(%arg0: i32) -> (i32, i32) {
    %c0_i32 = arith.constant 0 : i32
    %c0_i32_0 = arith.constant 0 : i32
    %c0_i32_1 = arith.constant 0 : i32
    return %c0_i32, %c0_i32_0 : i32, i32
  }
  func.func @transform_5(%arg0: i32) -> (i32, i32) {
    %c0_i32 = arith.constant 0 : i32
    %c0_i32_0 = arith.constant 0 : i32
    %c0_i32_1 = arith.constant 0 : i32
    return %c0_i32, %c0_i32_0 : i32, i32
  }
  func.func @transform_6(%arg0: i32) -> (i32, i32) {
    %c0_i32 = arith.constant 0 : i32
    %c0_i32_0 = arith.constant 0 : i32
    return %arg0, %c0_i32 : i32, i32
  }
  func.func @transform_7(%arg0: i32) -> (i32, i32) {
    %c0_i32 = arith.constant 0 : i32
    %c0_i32_0 = arith.constant 0 : i32
    return %arg0, %c0_i32 : i32, i32
  }
}

</mosaic_0001>

<llo_original>
// kernel: flow_step_forward.1
$region0: #{flow_step_forward.1}
  #allocation0 [shape = 'u32[]', space=smem, size = 0x4, offset = 0x4, fixed_abs, tag = 'smem constant byte address 0x4 - core index']
  #allocation1 [shape = 'u32[144,128]{1,0:T(1,128)}', space=vmem, size = 0x12000, scoped, tag = 'internal scratch']
  %s0 = inlined_call_operand.vmem [shape: f32[12], index: 0, kind: input, shape index: {}]
  %s1 = inlined_call_operand.vmem [shape: f32[8,384], index: 1, kind: input, shape index: {}]
  %s2 = inlined_call_operand.vmem [shape: bf16[128,128], index: 2, kind: input, shape index: {}]
  %s3 = inlined_call_operand.vmem [shape: bf16[256,256], index: 3, kind: input, shape index: {}]
  %s4 = inlined_call_operand.vmem [shape: bf16[32,256], index: 4, kind: input, shape index: {}]
  %s5 = inlined_call_operand.vmem [shape: f32[256,4], index: 5, kind: input, shape index: {}]
  %s6 = inlined_call_operand.vmem [shape: f32[8,384], index: 6, kind: output, shape index: {0}]
  %s7 = inlined_call_operand.vmem [shape: f32[8,128], index: 7, kind: output, shape index: {1}]
  %8 = xla_tuple %s6, %s7
  %s9 = sld [smem:[#allocation0]]
  $region46: #{flow_step_forward.1} parent=0
    _
  %s11 = ssub.s32 1, %s9
  %s12 = scalar_select 0, %s11, %s9
  $region1: #{flow_step_forward.1} parent=0
    #allocation2 [shape = 'u8[512]{0}', space=smem, size = 0x200, scoped, tag = 'input window, operand 0, single buffered']
    #allocation3 [shape = 's32[1]{0}', space=sflag, size = 0x4, scoped, tag = 'scoped memory for flow_step_forward.1']
    %13 = vsyncpa [#allocation3], 0
    // Predicated region
    $region2: #{flow_step_forward.1} parent=1 // pred_check
      _
    $region3: #{flow_step_forward.1} parent=1 // pred_check_branch
      %15 = sbr.rel (0) target = $region5
    $region4: #{flow_step_forward.1} parent=1 // pred_region
      %s17 = ssub.s32 16, 16
      %18 = vsyncadd [#allocation3], %s17
      %s20 = sshll.u32 %s0, 4
      %s21 = int_to_ptr.vmem [resolvable:$true] %s20
      %23 = dma.vmem_to_smem %s21, 16, [#allocation2], [#allocation3]
    $region5: #{flow_step_forward.1} parent=1 // pred_fallthru
      _
    // Predicated region
    $region6: #{flow_step_forward.1} parent=1 // pred_check
      _
    $region7: #{flow_step_forward.1} parent=1 // pred_check_branch
      %25 = sbr.rel (0) target = $region9
    $region8: #{flow_step_forward.1} parent=1 // pred_region
      _
    $region9: #{flow_step_forward.1} parent=1 // pred_fallthru
      _
    // Predicated region
    $region10: #{flow_step_forward.1} parent=1 // pred_check
      _
    $region11: #{flow_step_forward.1} parent=1 // pred_check_branch
      %27 = sbr.rel (0) target = $region13
    $region12: #{flow_step_forward.1} parent=1 // pred_region
      _
    $region13: #{flow_step_forward.1} parent=1 // pred_fallthru
      _
    // Predicated region
    $region14: #{flow_step_forward.1} parent=1 // pred_check
      _
    $region15: #{flow_step_forward.1} parent=1 // pred_check_branch
      %29 = sbr.rel (0) target = $region17
    $region16: #{flow_step_forward.1} parent=1 // pred_region
      _
    $region17: #{flow_step_forward.1} parent=1 // pred_fallthru
      _
    // Predicated region
    $region18: #{flow_step_forward.1} parent=1 // pred_check
      _
    $region19: #{flow_step_forward.1} parent=1 // pred_check_branch
      %31 = sbr.rel (0) target = $region21
    $region20: #{flow_step_forward.1} parent=1 // pred_region
      _
    $region21: #{flow_step_forward.1} parent=1 // pred_fallthru
      _
    // Predicated region
    $region22: #{flow_step_forward.1} parent=1 // pred_check
      _
    $region23: #{flow_step_forward.1} parent=1 // pred_check_branch
      %33 = sbr.rel (0) target = $region25
    $region24: #{flow_step_forward.1} parent=1 // pred_region
      _
    $region25: #{flow_step_forward.1} parent=1 // pred_fallthru
      _
    // Predicated region
    $region26: #{flow_step_forward.1} parent=1 // pred_check
      _
    $region27: #{flow_step_forward.1} parent=1 // pred_check_branch
      %35 = sbr.rel (0) target = $region29
    $region28: #{flow_step_forward.1} parent=1 // pred_region
      %36 = dma.done [#allocation3], 16
    $region29: #{flow_step_forward.1} parent=1 // pred_fallthru
      _
    %37 = sfence
    %v39 = vld [vmem:[%s1] sm:$0xff]
    %v40 = vld [vmem:[%s1 + $0x8] sm:$0xff]
    %v41 = vld [vmem:[%s1 + $0x10] sm:$0xff]
    %s42 = sld [smem:[#allocation2]]
    %v43 = vstv %s42
    %v44 = vmul.f32 %v43, %v39
    %s45 = sld [smem:[#allocation2 + $0x1]]
    %v46 = vstv %s45
    %v47 = vmul.f32 %v46, %v40
    %v48 = vadd.f32 %v44, %v47
    %s49 = sld [smem:[#allocation2 + $0x2]]
    %v50 = vstv %s49
    %v51 = vmul.f32 %v50, %v41
    %v52 = vadd.f32 %v48, %v51
    %s53 = sld [smem:[#allocation2 + $0x9]]
    %v54 = vstv %s53
    %v55 = vadd.f32 %v52, %v54
    %s56 = sld [smem:[#allocation2 + $0x3]]
    %v57 = vstv %s56
    %v58 = vmul.f32 %v57, %v39
    %s59 = sld [smem:[#allocation2 + $0x4]]
    %v60 = vstv %s59
    %v61 = vmul.f32 %v60, %v40
    %v62 = vadd.f32 %v58, %v61
    %s63 = sld [smem:[#allocation2 + $0x5]]
    %v64 = vstv %s63
    %v65 = vmul.f32 %v64, %v41
    %v66 = vadd.f32 %v62, %v65
    %s67 = sld [smem:[#allocation2 + $0xa]]
    %v68 = vstv %s67
    %v69 = vadd.f32 %v66, %v68
    %s70 = sld [smem:[#allocation2 + $0x6]]
    %v71 = vstv %s70
    %v72 = vmul.f32 %v71, %v39
    %s73 = sld [smem:[#allocation2 + $0x7]]
    %v74 = vstv %s73
    %v75 = vmul.f32 %v74, %v40
    %v76 = vadd.f32 %v72, %v75
    %s77 = sld [smem:[#allocation2 + $0x8]]
    %v78 = vstv %s77
    %v79 = vmul.f32 %v78, %v41
    %v80 = vadd.f32 %v76, %v79
    %s81 = sld [smem:[#allocation2 + $0xb]]
    %v82 = vstv %s81
    %v83 = vadd.f32 %v80, %v82
    %v84 = vld [vmem:[%s2] sm:$0xf]
    %v85 = vld [vmem:[%s2 + $0x4] sm:$0xf]
    %v86 = vld [vmem:[%s2 + $0x8] sm:$0xf]
    %v87 = vld [vmem:[%s2 + $0xc] sm:$0xf]
    %v88 = vld [vmem:[%s2 + $0x10] sm:$0xf]
    %v89 = vld [vmem:[%s2 + $0x14] sm:$0xf]
    %v90 = vld [vmem:[%s2 + $0x18] sm:$0xf]
    %v91 = vld [vmem:[%s2 + $0x1c] sm:$0xf]
    %v92 = vld [vmem:[%s2 + $0x20] sm:$0xf]
    %v93 = vld [vmem:[%s2 + $0x24] sm:$0xf]
    %v94 = vld [vmem:[%s2 + $0x28] sm:$0xf]
    %v95 = vld [vmem:[%s2 + $0x2c] sm:$0xf]
    %v96 = vld [vmem:[%s2 + $0x30] sm:$0xf]
    %v97 = vld [vmem:[%s2 + $0x34] sm:$0xf]
    %v98 = vld [vmem:[%s2 + $0x38] sm:$0xf]
    %v99 = vld [vmem:[%s2 + $0x3c] sm:$0xf]
    %v100 = vpack.c.bf16 %v55, %v55
    %v117 = vunpack.c.l.b16 %v84
    %v118 = vunpack.c.l.b16 %v85
    %v119 = vunpack.c.l.b16 %v86
    %v120 = vunpack.c.l.b16 %v87
    %v121 = vunpack.c.l.b16 %v88
    %v122 = vunpack.c.l.b16 %v89
    %v123 = vunpack.c.l.b16 %v90
    %v124 = vunpack.c.l.b16 %v91
    %v125 = vunpack.c.l.b16 %v92
    %v126 = vunpack.c.l.b16 %v93
    %v127 = vunpack.c.l.b16 %v94
    %v128 = vunpack.c.l.b16 %v95
    %v129 = vunpack.c.l.b16 %v96
    %v130 = vunpack.c.l.b16 %v97
    %v131 = vunpack.c.l.b16 %v98
    %v132 = vunpack.c.l.b16 %v99
    %v133 = vpack.c.b16 %v118, %v117
    %v134 = vpack.c.b16 %v120, %v119
    %v135 = vpack.c.b16 %v122, %v121
    %v136 = vpack.c.b16 %v124, %v123
    %v137 = vpack.c.b16 %v126, %v125
    %v138 = vpack.c.b16 %v128, %v127
    %v139 = vpack.c.b16 %v130, %v129
    %v140 = vpack.c.b16 %v132, %v131
    %149 = vmatprep.subr.bf16.mxu0 0
    %150 = vmatpush1.bf16.msra.mxu0 %v133
    %151 = vmatprep.subr.bf16.mxu0 0
    %152 = vmatpush1.bf16.msra.mxu0 %v134
    %153 = vmatprep.subr.bf16.mxu0 0
    %154 = vmatpush1.bf16.msra.mxu0 %v135
    %155 = vmatprep.subr.bf16.mxu0 0
    %156 = vmatpush1.bf16.msra.mxu0 %v136
    %157 = vmatprep.subr.bf16.mxu0 0
    %158 = vmatpush1.bf16.msra.mxu0 %v137
    %159 = vmatprep.subr.bf16.mxu0 0
    %160 = vmatpush1.bf16.msra.mxu0 %v138
    %161 = vmatprep.subr.bf16.mxu0 0
    %162 = vmatpush1.bf16.msra.mxu0 %v139
    %163 = vmatprep.subr.bf16.mxu0 0
    %164 = vmatpush1.bf16.msra.mxu0 %v140
    %165 = vmatprep.subr.bf16.mxu0 0
    %166 = vmatpush1.bf16.msra.mxu0 0
    %167 = vmatprep.subr.bf16.mxu0 0
    %168 = vmatpush1.bf16.msra.mxu0 0
    %169 = vmatprep.subr.bf16.mxu0 0
    %170 = vmatpush1.bf16.msra.mxu0 0
    %171 = vmatprep.subr.bf16.mxu0 0
    %172 = vmatpush1.bf16.msra.mxu0 0
    %173 = vmatprep.subr.bf16.mxu0 0
    %174 = vmatpush1.bf16.msra.mxu0 0
    %175 = vmatprep.subr.bf16.mxu0 0
    %176 = vmatpush1.bf16.msra.mxu0 0
    %177 = vmatprep.subr.bf16.mxu0 0
    %178 = vmatpush1.bf16.msra.mxu0 0
    %179 = vmatprep.subr.bf16.mxu0 0
    %180 = vmatpush1.bf16.msra.mxu0 0
    %181 = vmatprep.mubr.bf16.mxu0 0
    %182 = vmatmul.mubr.bf16.gmra.mrb[0].mxu0 %v100
    %v183 = vpop.f32.mrb[0].mxu0
    %v184 = vadd.f32 0.0, %v183
    %v185 = vpop.f32.mrb[0].mxu0
    %v186 = vpop.f32.mrb[0].mxu0
    %v187 = vpop.f32.mrb[0].mxu0
    %188 = vdwg.mxu0
    %v189 = vld [vmem:[%s5] sm:$0xff]
    %v190 = vld [vmem:[%s5 + $0x8] sm:$0xff]
    %v191 = vld [vmem:[%s5 + $0x10] sm:$0xff]
    %v192 = vld [vmem:[%s5 + $0x18] sm:$0xff]
    %v193 = vld [vmem:[%s5 + $0x20] sm:$0xff]
    %v194 = vld [vmem:[%s5 + $0x28] sm:$0xff]
    %v195 = vld [vmem:[%s5 + $0x30] sm:$0xff]
    %v196 = vld [vmem:[%s5 + $0x38] sm:$0xff]
    %v197 = vld [vmem:[%s5 + $0x40] sm:$0xff]
    %v198 = vld [vmem:[%s5 + $0x48] sm:$0xff]
    %v199 = vld [vmem:[%s5 + $0x50] sm:$0xff]
    %v200 = vld [vmem:[%s5 + $0x58] sm:$0xff]
    %v201 = vld [vmem:[%s5 + $0x60] sm:$0xff]
    %v202 = vld [vmem:[%s5 + $0x68] sm:$0xff]
    %v203 = vld [vmem:[%s5 + $0x70] sm:$0xff]
    %v204 = vld [vmem:[%s5 + $0x78] sm:$0xff]
    %v205 = vld [vmem:[%s5 + $0x80] sm:$0xff]
    %v206 = vld [vmem:[%s5 + $0x88] sm:$0xff]
    %v207 = vld [vmem:[%s5 + $0x90] sm:$0xff]
    %v208 = vld [vmem:[%s5 + $0x98] sm:$0xff]
    %v209 = vld [vmem:[%s5 + $0xa0] sm:$0xff]
    %v210 = vld [vmem:[%s5 + $0xa8] sm:$0xff]
    %v211 = vld [vmem:[%s5 + $0xb0] sm:$0xff]
    %v212 = vld [vmem:[%s5 + $0xb8] sm:$0xff]
    %v213 = vld [vmem:[%s5 + $0xc0] sm:$0xff]
    %v214 = vld [vmem:[%s5 + $0xc8] sm:$0xff]
    %v215 = vld [vmem:[%s5 + $0xd0] sm:$0xff]
    %v216 = vld [vmem:[%s5 + $0xd8] sm:$0xff]
    %v217 = vld [vmem:[%s5 + $0xe0] sm:$0xff]
    %v218 = vld [vmem:[%s5 + $0xe8] sm:$0xff]
    %v219 = vld [vmem:[%s5 + $0xf0] sm:$0xff]
    %v220 = vld [vmem:[%s5 + $0xf8] sm:$0xff]
    %222 = vset.pattern.permute.xlu0 0
    %223 = vperm.xlu0 %222, %v189
    %v224 = vpop.permute.xlu0 %223
    %227 = vset.pattern.permute.xlu0 0
    %228 = vperm.xlu0 %227, %v190
    %v229 = vpop.permute.xlu0 %228
    %232 = vset.pattern.permute.xlu0 0
    %233 = vperm.xlu0 %232, %v191
    %v234 = vpop.permute.xlu0 %233
    %237 = vset.pattern.permute.xlu0 0
    %238 = vperm.xlu0 %237, %v192
    %v239 = vpop.permute.xlu0 %238
    %242 = vset.pattern.permute.xlu0 0
    %243 = vperm.xlu0 %242, %v193
    %v244 = vpop.permute.xlu0 %243
    %247 = vset.pattern.permute.xlu0 0
    %248 = vperm.xlu0 %247, %v194
    %v249 = vpop.permute.xlu0 %248
    %252 = vset.pattern.permute.xlu0 0
    %253 = vperm.xlu0 %252, %v195
    %v254 = vpop.permute.xlu0 %253
    %257 = vset.pattern.permute.xlu0 0
    %258 = vperm.xlu0 %257, %v196
    %v259 = vpop.permute.xlu0 %258
    %262 = vset.pattern.permute.xlu0 0
    %263 = vperm.xlu0 %262, %v197
    %v264 = vpop.permute.xlu0 %263
    %267 = vset.pattern.permute.xlu0 0
    %268 = vperm.xlu0 %267, %v198
    %v269 = vpop.permute.xlu0 %268
    %272 = vset.pattern.permute.xlu0 0
    %273 = vperm.xlu0 %272, %v199
    %v274 = vpop.permute.xlu0 %273
    %277 = vset.pattern.permute.xlu0 0
    %278 = vperm.xlu0 %277, %v200
    %v279 = vpop.permute.xlu0 %278
    %282 = vset.pattern.permute.xlu0 0
    %283 = vperm.xlu0 %282, %v201
    %v284 = vpop.permute.xlu0 %283
    %287 = vset.pattern.permute.xlu0 0
    %288 = vperm.xlu0 %287, %v202
    %v289 = vpop.permute.xlu0 %288
    %292 = vset.pattern.permute.xlu0 0
    %293 = vperm.xlu0 %292, %v203
    %v294 = vpop.permute.xlu0 %293
    %297 = vset.pattern.permute.xlu0 0
    %298 = vperm.xlu0 %297, %v204
    %v299 = vpop.permute.xlu0 %298
    %302 = vset.pattern.permute.xlu0 0
    %303 = vperm.xlu0 %302, %v205
    %v304 = vpop.permute.xlu0 %303
    %307 = vset.pattern.permute.xlu0 0
    %308 = vperm.xlu0 %307, %v206
    %v309 = vpop.permute.xlu0 %308
    %312 = vset.pattern.permute.xlu0 0
    %313 = vperm.xlu0 %312, %v207
    %v314 = vpop.permute.xlu0 %313
    %317 = vset.pattern.permute.xlu0 0
    %318 = vperm.xlu0 %317, %v208
    %v319 = vpop.permute.xlu0 %318
    %322 = vset.pattern.permute.xlu0 0
    %323 = vperm.xlu0 %322, %v209
    %v324 = vpop.permute.xlu0 %323
    %327 = vset.pattern.permute.xlu0 0
    %328 = vperm.xlu0 %327, %v210
    %v329 = vpop.permute.xlu0 %328
    %332 = vset.pattern.permute.xlu0 0
    %333 = vperm.xlu0 %332, %v211
    %v334 = vpop.permute.xlu0 %333
    %337 = vset.pattern.permute.xlu0 0
    %338 = vperm.xlu0 %337, %v212
    %v339 = vpop.permute.xlu0 %338
    %342 = vset.pattern.permute.xlu0 0
    %343 = vperm.xlu0 %342, %v213
    %v344 = vpop.permute.xlu0 %343
    %347 = vset.pattern.permute.xlu0 0
    %348 = vperm.xlu0 %347, %v214
    %v349 = vpop.permute.xlu0 %348
    %352 = vset.pattern.permute.xlu0 0
    %353 = vperm.xlu0 %352, %v215
    %v354 = vpop.permute.xlu0 %353
    %357 = vset.pattern.permute.xlu0 0
    %358 = vperm.xlu0 %357, %v216
    %v359 = vpop.permute.xlu0 %358
    %362 = vset.pattern.permute.xlu0 0
    %363 = vperm.xlu0 %362, %v217
    %v364 = vpop.permute.xlu0 %363
    %367 = vset.pattern.permute.xlu0 0
    %368 = vperm.xlu0 %367, %v218
    %v369 = vpop.permute.xlu0 %368
    %372 = vset.pattern.permute.xlu0 0
    %373 = vperm.xlu0 %372, %v219
    %v374 = vpop.permute.xlu0 %373
    %377 = vset.pattern.permute.xlu0 0
    %378 = vperm.xlu0 %377, %v220
    %v379 = vpop.permute.xlu0 %378
    %v381 = vmul.f32 %v224, %v184
    %v382 = vmul.f32 %v229, %v184
    %v383 = vmul.f32 %v234, %v184
    %v384 = vmul.f32 %v239, %v184
    %v385 = vmul.f32 %v244, %v184
    %v386 = vmul.f32 %v249, %v184
    %v387 = vmul.f32 %v254, %v184
    %v388 = vmul.f32 %v259, %v184
    %v389 = vmul.f32 %v264, %v184
    %v390 = vmul.f32 %v269, %v184
    %v391 = vmul.f32 %v274, %v184
    %v392 = vmul.f32 %v279, %v184
    %v393 = vmul.f32 %v284, %v184
    %v394 = vmul.f32 %v289, %v184
    %v395 = vmul.f32 %v294, %v184
    %v396 = vmul.f32 %v299, %v184
    %v397 = vmul.f32 %v304, %v184
    %v398 = vmul.f32 %v309, %v184
    %v399 = vmul.f32 %v314, %v184
    %v400 = vmul.f32 %v319, %v184
    %v401 = vmul.f32 %v324, %v184
    %v402 = vmul.f32 %v329, %v184
    %v403 = vmul.f32 %v334, %v184
    %v404 = vmul.f32 %v339, %v184
    %v405 = vmul.f32 %v344, %v184
    %v406 = vmul.f32 %v349, %v184
    %v407 = vmul.f32 %v354, %v184
    %v408 = vmul.f32 %v359, %v184
    %v409 = vmul.f32 %v364, %v184
    %v410 = vmul.f32 %v369, %v184
    %v411 = vmul.f32 %v374, %v184
    %v412 = vmul.f32 %v379, %v184
    %413 = vset.pattern.permute.xlu0 1
    %414 = vperm.xlu0 %413, %v189
    %v415 = vpop.permute.xlu0 %414
    %417 = vset.pattern.permute.xlu0 1
    %418 = vperm.xlu0 %417, %v190
    %v419 = vpop.permute.xlu0 %418
    %421 = vset.pattern.permute.xlu0 1
    %422 = vperm.xlu0 %421, %v191
    %v423 = vpop.permute.xlu0 %422
    %425 = vset.pattern.permute.xlu0 1
    %426 = vperm.xlu0 %425, %v192
    %v427 = vpop.permute.xlu0 %426
    %429 = vset.pattern.permute.xlu0 1
    %430 = vperm.xlu0 %429, %v193
    %v431 = vpop.permute.xlu0 %430
    %433 = vset.pattern.permute.xlu0 1
    %434 = vperm.xlu0 %433, %v194
    %v435 = vpop.permute.xlu0 %434
    %437 = vset.pattern.permute.xlu0 1
    %438 = vperm.xlu0 %437, %v195
    %v439 = vpop.permute.xlu0 %438
    %441 = vset.pattern.permute.xlu0 1
    %442 = vperm.xlu0 %441, %v196
    %v443 = vpop.permute.xlu0 %442
    %445 = vset.pattern.permute.xlu0 1
    %446 = vperm.xlu0 %445, %v197
    %v447 = vpop.permute.xlu0 %446
    %449 = vset.pattern.permute.xlu0 1
    %450 = vperm.xlu0 %449, %v198
    %v451 = vpop.permute.xlu0 %450
    %453 = vset.pattern.permute.xlu0 1
    %454 = vperm.xlu0 %453, %v199
    %v455 = vpop.permute.xlu0 %454
    %457 = vset.pattern.permute.xlu0 1
    %458 = vperm.xlu0 %457, %v200
    %v459 = vpop.permute.xlu0 %458
    %461 = vset.pattern.permute.xlu0 1
    %462 = vperm.xlu0 %461, %v201
    %v463 = vpop.permute.xlu0 %462
    %465 = vset.pattern.permute.xlu0 1
    %466 = vperm.xlu0 %465, %v202
    %v467 = vpop.permute.xlu0 %466
    %469 = vset.pattern.permute.xlu0 1
    %470 = vperm.xlu0 %469, %v203
    %v471 = vpop.permute.xlu0 %470
    %473 = vset.pattern.permute.xlu0 1
    %474 = vperm.xlu0 %473, %v204
    %v475 = vpop.permute.xlu0 %474
    %477 = vset.pattern.permute.xlu0 1
    %478 = vperm.xlu0 %477, %v205
    %v479 = vpop.permute.xlu0 %478
    %481 = vset.pattern.permute.xlu0 1
    %482 = vperm.xlu0 %481, %v206
    %v483 = vpop.permute.xlu0 %482
    %485 = vset.pattern.permute.xlu0 1
    %486 = vperm.xlu0 %485, %v207
    %v487 = vpop.permute.xlu0 %486
    %489 = vset.pattern.permute.xlu0 1
    %490 = vperm.xlu0 %489, %v208
    %v491 = vpop.permute.xlu0 %490
    %493 = vset.pattern.permute.xlu0 1
    %494 = vperm.xlu0 %493, %v209
    %v495 = vpop.permute.xlu0 %494
    %497 = vset.pattern.permute.xlu0 1
    %498 = vperm.xlu0 %497, %v210
    %v499 = vpop.permute.xlu0 %498
    %501 = vset.pattern.permute.xlu0 1
    %502 = vperm.xlu0 %501, %v211
    %v503 = vpop.permute.xlu0 %502
    %505 = vset.pattern.permute.xlu0 1
    %506 = vperm.xlu0 %505, %v212
    %v507 = vpop.permute.xlu0 %506
    %509 = vset.pattern.permute.xlu0 1
    %510 = vperm.xlu0 %509, %v213
    %v511 = vpop.permute.xlu0 %510
    %513 = vset.pattern.permute.xlu0 1
    %514 = vperm.xlu0 %513, %v214
    %v515 = vpop.permute.xlu0 %514
    %517 = vset.pattern.permute.xlu0 1
    %518 = vperm.xlu0 %517, %v215
    %v519 = vpop.permute.xlu0 %518
    %521 = vset.pattern.permute.xlu0 1
    %522 = vperm.xlu0 %521, %v216
    %v523 = vpop.permute.xlu0 %522
    %525 = vset.pattern.permute.xlu0 1
    %526 = vperm.xlu0 %525, %v217
    %v527 = vpop.permute.xlu0 %526
    %529 = vset.pattern.permute.xlu0 1
    %530 = vperm.xlu0 %529, %v218
    %v531 = vpop.permute.xlu0 %530
    %533 = vset.pattern.permute.xlu0 1
    %534 = vperm.xlu0 %533, %v219
    %v535 = vpop.permute.xlu0 %534
    %537 = vset.pattern.permute.xlu0 1
    %538 = vperm.xlu0 %537, %v220
    %v539 = vpop.permute.xlu0 %538
    %v541 = vadd.f32 %v381, %v415
    %v542 = vadd.f32 %v382, %v419
    %v543 = vadd.f32 %v383, %v423
    %v544 = vadd.f32 %v384, %v427
    %v545 = vadd.f32 %v385, %v431
    %v546 = vadd.f32 %v386, %v435
    %v547 = vadd.f32 %v387, %v439
    %v548 = vadd.f32 %v388, %v443
    %v549 = vadd.f32 %v389, %v447
    %v550 = vadd.f32 %v390, %v451
    %v551 = vadd.f32 %v391, %v455
    %v552 = vadd.f32 %v392, %v459
    %v553 = vadd.f32 %v393, %v463
    %v554 = vadd.f32 %v394, %v467
    %v555 = vadd.f32 %v395, %v471
    %v556 = vadd.f32 %v396, %v475
    %v557 = vadd.f32 %v397, %v479
    %v558 = vadd.f32 %v398, %v483
    %v559 = vadd.f32 %v399, %v487
    %v560 = vadd.f32 %v400, %v491
    %v561 = vadd.f32 %v401, %v495
    %v562 = vadd.f32 %v402, %v499
    %v563 = vadd.f32 %v403, %v503
    %v564 = vadd.f32 %v404, %v507
    %v565 = vadd.f32 %v405, %v511
    %v566 = vadd.f32 %v406, %v515
    %v567 = vadd.f32 %v407, %v519
    %v568 = vadd.f32 %v408, %v523
    %v569 = vadd.f32 %v409, %v527
    %v570 = vadd.f32 %v410, %v531
    %v571 = vadd.f32 %v411, %v535
    %v572 = vadd.f32 %v412, %v539
    %v573 = vmax.f32 %v541, 0.0
    %v574 = vmax.f32 %v542, 0.0
    %v575 = vmax.f32 %v543, 0.0
    %v576 = vmax.f32 %v544, 0.0
    %v577 = vmax.f32 %v545, 0.0
    %v578 = vmax.f32 %v546, 0.0
    %v579 = vmax.f32 %v547, 0.0
    %v580 = vmax.f32 %v548, 0.0
    %v581 = vmax.f32 %v549, 0.0
    %v582 = vmax.f32 %v550, 0.0
    %v583 = vmax.f32 %v551, 0.0
    %v584 = vmax.f32 %v552, 0.0
    %v585 = vmax.f32 %v553, 0.0
    %v586 = vmax.f32 %v554, 0.0
    %v587 = vmax.f32 %v555, 0.0
    %v588 = vmax.f32 %v556, 0.0
    %v589 = vmax.f32 %v557, 0.0
    %v590 = vmax.f32 %v558, 0.0
    %v591 = vmax.f32 %v559, 0.0
    %v592 = vmax.f32 %v560, 0.0
    %v593 = vmax.f32 %v561, 0.0
    %v594 = vmax.f32 %v562, 0.0
    %v595 = vmax.f32 %v563, 0.0
    %v596 = vmax.f32 %v564, 0.0
    %v597 = vmax.f32 %v565, 0.0
    %v598 = vmax.f32 %v566, 0.0
    %v599 = vmax.f32 %v567, 0.0
    %v600 = vmax.f32 %v568, 0.0
    %v601 = vmax.f32 %v569, 0.0
    %v602 = vmax.f32 %v570, 0.0
    %v603 = vmax.f32 %v571, 0.0
    %v604 = vmax.f32 %v572, 0.0
    %v605 = vld [vmem:[%s3] sm:$0xff]
    %v606 = vld [vmem:[%s3 + $0x8] sm:$0xff]
    %v607 = vld [vmem:[%s3 + $0x10] sm:$0xff]
    %v608 = vld [vmem:[%s3 + $0x18] sm:$0xff]
    %v609 = vld [vmem:[%s3 + $0x20] sm:$0xff]
    %v610 = vld [vmem:[%s3 + $0x28] sm:$0xff]
    %v611 = vld [vmem:[%s3 + $0x30] sm:$0xff]
    %v612 = vld [vmem:[%s3 + $0x38] sm:$0xff]
    %v613 = vld [vmem:[%s3 + $0x40] sm:$0xff]
    %v614 = vld [vmem:[%s3 + $0x48] sm:$0xff]
    %v615 = vld [vmem:[%s3 + $0x50] sm:$0xff]
    %v616 = vld [vmem:[%s3 + $0x58] sm:$0xff]
    %v617 = vld [vmem:[%s3 + $0x60] sm:$0xff]
    %v618 = vld [vmem:[%s3 + $0x68] sm:$0xff]
    %v619 = vld [vmem:[%s3 + $0x70] sm:$0xff]
    %v620 = vld [vmem:[%s3 + $0x78] sm:$0xff]
    %v621 = vld [vmem:[%s3 + $0x80] sm:$0xff]
    %v622 = vld [vmem:[%s3 + $0x88] sm:$0xff]
    %v623 = vld [vmem:[%s3 + $0x90] sm:$0xff]
    %v624 = vld [vmem:[%s3 + $0x98] sm:$0xff]
    %v625 = vld [vmem:[%s3 + $0xa0] sm:$0xff]
    %v626 = vld [vmem:[%s3 + $0xa8] sm:$0xff]
    %v627 = vld [vmem:[%s3 + $0xb0] sm:$0xff]
    %v628 = vld [vmem:[%s3 + $0xb8] sm:$0xff]
    %v629 = vld [vmem:[%s3 + $0xc0] sm:$0xff]
    %v630 = vld [vmem:[%s3 + $0xc8] sm:$0xff]
    %v631 = vld [vmem:[%s3 + $0xd0] sm:$0xff]
    %v632 = vld [vmem:[%s3 + $0xd8] sm:$0xff]
    %v633 = vld [vmem:[%s3 + $0xe0] sm:$0xff]
    %v634 = vld [vmem:[%s3 + $0xe8] sm:$0xff]
    %v635 = vld [vmem:[%s3 + $0xf0] sm:$0xff]
    %v636 = vld [vmem:[%s3 + $0xf8] sm:$0xff]
    %v637 = vpack.c.bf16 %v574, %v573
    %v638 = vpack.c.bf16 %v576, %v575
    %v639 = vpack.c.bf16 %v578, %v577
    %v640 = vpack.c.bf16 %v580, %v579
    %v641 = vpack.c.bf16 %v582, %v581
    %v642 = vpack.c.bf16 %v584, %v583
    %v643 = vpack.c.bf16 %v586, %v585
    %v644 = vpack.c.bf16 %v588, %v587
    %v645 = vpack.c.bf16 %v590, %v589
    %v646 = vpack.c.bf16 %v592, %v591
    %v647 = vpack.c.bf16 %v594, %v593
    %v648 = vpack.c.bf16 %v596, %v595
    %v649 = vpack.c.bf16 %v598, %v597
    %v650 = vpack.c.bf16 %v600, %v599
    %v651 = vpack.c.bf16 %v602, %v601
    %v652 = vpack.c.bf16 %v604, %v603
    %v685 = vunpack.c.l.b16 %v605
    %v686 = vunpack.c.h.b16 %v605
    %v687 = vunpack.c.l.b16 %v606
    %v688 = vunpack.c.h.b16 %v606
    %v689 = vunpack.c.l.b16 %v607
    %v690 = vunpack.c.h.b16 %v607
    %v691 = vunpack.c.l.b16 %v608
    %v692 = vunpack.c.h.b16 %v608
    %v693 = vunpack.c.l.b16 %v609
    %v694 = vunpack.c.h.b16 %v609
    %v695 = vunpack.c.l.b16 %v610
    %v696 = vunpack.c.h.b16 %v610
    %v697 = vunpack.c.l.b16 %v611
    %v698 = vunpack.c.h.b16 %v611
    %v699 = vunpack.c.l.b16 %v612
    %v700 = vunpack.c.h.b16 %v612
    %v701 = vunpack.c.l.b16 %v613
    %v702 = vunpack.c.h.b16 %v613
    %v703 = vunpack.c.l.b16 %v614
    %v704 = vunpack.c.h.b16 %v614
    %v705 = vunpack.c.l.b16 %v615
    %v706 = vunpack.c.h.b16 %v615
    %v707 = vunpack.c.l.b16 %v616
    %v708 = vunpack.c.h.b16 %v616
    %v709 = vunpack.c.l.b16 %v617
    %v710 = vunpack.c.h.b16 %v617
    %v711 = vunpack.c.l.b16 %v618
    %v712 = vunpack.c.h.b16 %v618
    %v713 = vunpack.c.l.b16 %v619
    %v714 = vunpack.c.h.b16 %v619
    %v715 = vunpack.c.l.b16 %v620
    %v716 = vunpack.c.h.b16 %v620
    %v717 = vunpack.c.l.b16 %v621
    %v718 = vunpack.c.h.b16 %v621
    %v719 = vunpack.c.l.b16 %v622
    %v720 = vunpack.c.h.b16 %v622
    %v721 = vunpack.c.l.b16 %v623
    %v722 = vunpack.c.h.b16 %v623
    %v723 = vunpack.c.l.b16 %v624
    %v724 = vunpack.c.h.b16 %v624
    %v725 = vunpack.c.l.b16 %v625
    %v726 = vunpack.c.h.b16 %v625
    %v727 = vunpack.c.l.b16 %v626
    %v728 = vunpack.c.h.b16 %v626
    %v729 = vunpack.c.l.b16 %v627
    %v730 = vunpack.c.h.b16 %v627
    %v731 = vunpack.c.l.b16 %v628
    %v732 = vunpack.c.h.b16 %v628
    %v733 = vunpack.c.l.b16 %v629
    %v734 = vunpack.c.h.b16 %v629
    %v735 = vunpack.c.l.b16 %v630
    %v736 = vunpack.c.h.b16 %v630
    %v737 = vunpack.c.l.b16 %v631
    %v738 = vunpack.c.h.b16 %v631
    %v739 = vunpack.c.l.b16 %v632
    %v740 = vunpack.c.h.b16 %v632
    %v741 = vunpack.c.l.b16 %v633
    %v742 = vunpack.c.h.b16 %v633
    %v743 = vunpack.c.l.b16 %v634
    %v744 = vunpack.c.h.b16 %v634
    %v745 = vunpack.c.l.b16 %v635
    %v746 = vunpack.c.h.b16 %v635
    %v747 = vunpack.c.l.b16 %v636
    %v748 = vunpack.c.h.b16 %v636
    %v749 = vpack.c.b16 %v687, %v685
    %v750 = vpack.c.b16 %v688, %v686
    %v751 = vpack.c.b16 %v691, %v689
    %v752 = vpack.c.b16 %v692, %v690
    %v753 = vpack.c.b16 %v695, %v693
    %v754 = vpack.c.b16 %v696, %v694
    %v755 = vpack.c.b16 %v699, %v697
    %v756 = vpack.c.b16 %v700, %v698
    %v757 = vpack.c.b16 %v703, %v701
    %v758 = vpack.c.b16 %v704, %v702
    %v759 = vpack.c.b16 %v707, %v705
    %v760 = vpack.c.b16 %v708, %v706
    %v761 = vpack.c.b16 %v711, %v709
    %v762 = vpack.c.b16 %v712, %v710
    %v763 = vpack.c.b16 %v715, %v713
    %v764 = vpack.c.b16 %v716, %v714
    %v765 = vpack.c.b16 %v719, %v717
    %v766 = vpack.c.b16 %v720, %v718
    %v767 = vpack.c.b16 %v723, %v721
    %v768 = vpack.c.b16 %v724, %v722
    %v769 = vpack.c.b16 %v727, %v725
    %v770 = vpack.c.b16 %v728, %v726
    %v771 = vpack.c.b16 %v731, %v729
    %v772 = vpack.c.b16 %v732, %v730
    %v773 = vpack.c.b16 %v735, %v733
    %v774 = vpack.c.b16 %v736, %v734
    %v775 = vpack.c.b16 %v739, %v737
    %v776 = vpack.c.b16 %v740, %v738
    %v777 = vpack.c.b16 %v743, %v741
    %v778 = vpack.c.b16 %v744, %v742
    %v779 = vpack.c.b16 %v747, %v745
    %v780 = vpack.c.b16 %v748, %v746
    %813 = vmatprep.subr.bf16.mxu0 0
    %814 = vmatpush1.bf16.msra.mxu0 %v637
    %815 = vmatprep.subr.bf16.mxu0 0
    %816 = vmatpush1.bf16.msra.mxu0 %v638
    %817 = vmatprep.subr.bf16.mxu0 0
    %818 = vmatpush1.bf16.msra.mxu0 %v639
    %819 = vmatprep.subr.bf16.mxu0 0
    %820 = vmatpush1.bf16.msra.mxu0 %v640
    %821 = vmatprep.subr.bf16.mxu0 0
    %822 = vmatpush1.bf16.msra.mxu0 %v641
    %823 = vmatprep.subr.bf16.mxu0 0
    %824 = vmatpush1.bf16.msra.mxu0 %v642
    %825 = vmatprep.subr.bf16.mxu0 0
    %826 = vmatpush1.bf16.msra.mxu0 %v643
    %827 = vmatprep.subr.bf16.mxu0 0
    %828 = vmatpush1.bf16.msra.mxu0 %v644
    %829 = vmatprep.subr.bf16.mxu0 0
    %830 = vmatpush1.bf16.msra.mxu0 %v645
    %831 = vmatprep.subr.bf16.mxu0 0
    %832 = vmatpush1.bf16.msra.mxu0 %v646
    %833 = vmatprep.subr.bf16.mxu0 0
    %834 = vmatpush1.bf16.msra.mxu0 %v647
    %835 = vmatprep.subr.bf16.mxu0 0
    %836 = vmatpush1.bf16.msra.mxu0 %v648
    %837 = vmatprep.subr.bf16.mxu0 0
    %838 = vmatpush1.bf16.msra.mxu0 %v649
    %839 = vmatprep.subr.bf16.mxu0 0
    %840 = vmatpush1.bf16.msra.mxu0 %v650
    %841 = vmatprep.subr.bf16.mxu0 0
    %842 = vmatpush1.bf16.msra.mxu0 %v651
    %843 = vmatprep.subr.bf16.mxu0 0
    %844 = vmatpush1.bf16.msra.mxu0 %v652
    %845 = vmatprep.mubr.bf16.mxu0 %v750
    %846 = vmatmul.mubr.bf16.gmra.mrb[0].mxu0 %v749
    %v847 = vpop.f32.mrb[0].mxu0
    %v848 = vadd.f32 0.0, %v847
    %v849 = vpop.f32.mrb[0].mxu0
    %v850 = vpop.f32.mrb[0].mxu0
    %v851 = vadd.f32 0.0, %v850
    %v852 = vpop.f32.mrb[0].mxu0
    %853 = vmatprep.mubr.bf16.mxu0 %v752
    %854 = vmatmul.mubr.bf16.gmra.mrb[0].mxu0 %v751
    %v855 = vpop.f32.mrb[0].mxu0
    %v856 = vadd.f32 0.0, %v855
    %v857 = vpop.f32.mrb[0].mxu0
    %v858 = vpop.f32.mrb[0].mxu0
    %v859 = vadd.f32 0.0, %v858
    %v860 = vpop.f32.mrb[0].mxu0
    %861 = vmatprep.mubr.bf16.mxu0 %v754
    %862 = vmatmul.mubr.bf16.gmra.mrb[0].mxu0 %v753
    %v863 = vpop.f32.mrb[0].mxu0
    %v864 = vadd.f32 0.0, %v863
    %v865 = vpop.f32.mrb[0].mxu0
    %v866 = vpop.f32.mrb[0].mxu0
    %v867 = vadd.f32 0.0, %v866
    %v868 = vpop.f32.mrb[0].mxu0
    %869 = vmatprep.mubr.bf16.mxu0 %v756
    %870 = vmatmul.mubr.bf16.gmra.mrb[0].mxu0 %v755
    %v871 = vpop.f32.mrb[0].mxu0
    %v872 = vadd.f32 0.0, %v871
    %v873 = vpop.f32.mrb[0].mxu0
    %v874 = vpop.f32.mrb[0].mxu0
    %v875 = vadd.f32 0.0, %v874
    %v876 = vpop.f32.mrb[0].mxu0
    %877 = vmatprep.mubr.bf16.mxu0 %v758
    %878 = vmatmul.mubr.bf16.gmra.mrb[0].mxu0 %v757
    %v879 = vpop.f32.mrb[0].mxu0
    %v880 = vadd.f32 0.0, %v879
    %v881 = vpop.f32.mrb[0].mxu0
    %v882 = vpop.f32.mrb[0].mxu0
    %v883 = vadd.f32 0.0, %v882
    %v884 = vpop.f32.mrb[0].mxu0
    %885 = vmatprep.mubr.bf16.mxu0 %v760
    %886 = vmatmul.mubr.bf16.gmra.mrb[0].mxu0 %v759
    %v887 = vpop.f32.mrb[0].mxu0
    %v888 = vadd.f32 0.0, %v887
    %v889 = vpop.f32.mrb[0].mxu0
    %v890 = vpop.f32.mrb[0].mxu0
    %v891 = vadd.f32 0.0, %v890
    %v892 = vpop.f32.mrb[0].mxu0
    %893 = vmatprep.mubr.bf16.mxu0 %v762
    %894 = vmatmul.mubr.bf16.gmra.mrb[0].mxu0 %v761
    %v895 = vpop.f32.mrb[0].mxu0
    %v896 = vadd.f32 0.0, %v895
    %v897 = vpop.f32.mrb[0].mxu0
    %v898 = vpop.f32.mrb[0].mxu0
    %v899 = vadd.f32 0.0, %v898
    %v900 = vpop.f32.mrb[0].mxu0
    %901 = vmatprep.mubr.bf16.mxu0 %v764
    %902 = vmatmul.mubr.bf16.gmra.mrb[0].mxu0 %v763
    %v903 = vpop.f32.mrb[0].mxu0
    %v904 = vadd.f32 0.0, %v903
    %v905 = vpop.f32.mrb[0].mxu0
    %v906 = vpop.f32.mrb[0].mxu0
    %v907 = vadd.f32 0.0, %v906
    %v908 = vpop.f32.mrb[0].mxu0
    %909 = vmatprep.mubr.bf16.mxu0 %v766
    %910 = vmatmul.mubr.bf16.gmra.mrb[0].mxu0 %v765
    %v911 = vpop.f32.mrb[0].mxu0
    %v912 = vadd.f32 0.0, %v911
    %v913 = vpop.f32.mrb[0].mxu0
    %v914 = vpop.f32.mrb[0].mxu0
    %v915 = vadd.f32 0.0, %v914
    %v916 = vpop.f32.mrb[0].mxu0
    %917 = vmatprep.mubr.bf16.mxu0 %v768
    %918 = vmatmul.mubr.bf16.gmra.mrb[0].mxu0 %v767
    %v919 = vpop.f32.mrb[0].mxu0
    %v920 = vadd.f32 0.0, %v919
    %v921 = vpop.f32.mrb[0].mxu0
    %v922 = vpop.f32.mrb[0].mxu0
    %v923 = vadd.f32 0.0, %v922
    %v924 = vpop.f32.mrb[0].mxu0
    %925 = vmatprep.mubr.bf16.mxu0 %v770
    %926 = vmatmul.mubr.bf16.gmra.mrb[0].mxu0 %v769
    %v927 = vpop.f32.mrb[0].mxu0
    %v928 = vadd.f32 0.0, %v927
    %v929 = vpop.f32.mrb[0].mxu0
    %v930 = vpop.f32.mrb[0].mxu0
    %v931 = vadd.f32 0.0, %v930
    %v932 = vpop.f32.mrb[0].mxu0
    %933 = vmatprep.mubr.bf16.mxu0 %v772
    %934 = vmatmul.mubr.bf16.gmra.mrb[0].mxu0 %v771
    %v935 = vpop.f32.mrb[0].mxu0
    %v936 = vadd.f32 0.0, %v935
    %v937 = vpop.f32.mrb[0].mxu0
    %v938 = vpop.f32.mrb[0].mxu0
    %v939 = vadd.f32 0.0, %v938
    %v940 = vpop.f32.mrb[0].mxu0
    %941 = vmatprep.mubr.bf16.mxu0 %v774
    %942 = vmatmul.mubr.bf16.gmra.mrb[0].mxu0 %v773
    %v943 = vpop.f32.mrb[0].mxu0
    %v944 = vadd.f32 0.0, %v943
    %v945 = vpop.f32.mrb[0].mxu0
    %v946 = vpop.f32.mrb[0].mxu0
    %v947 = vadd.f32 0.0, %v946
    %v948 = vpop.f32.mrb[0].mxu0
    %949 = vmatprep.mubr.bf16.mxu0 %v776
    %950 = vmatmul.mubr.bf16.gmra.mrb[0].mxu0 %v775
    %v951 = vpop.f32.mrb[0].mxu0
    %v952 = vadd.f32 0.0, %v951
    %v953 = vpop.f32.mrb[0].mxu0
    %v954 = vpop.f32.mrb[0].mxu0
    %v955 = vadd.f32 0.0, %v954
    %v956 = vpop.f32.mrb[0].mxu0
    %957 = vmatprep.mubr.bf16.mxu0 %v778
    %958 = vmatmul.mubr.bf16.gmra.mrb[0].mxu0 %v777
    %v959 = vpop.f32.mrb[0].mxu0
    %v960 = vadd.f32 0.0, %v959
    %v961 = vpop.f32.mrb[0].mxu0
    %v962 = vpop.f32.mrb[0].mxu0
    %v963 = vadd.f32 0.0, %v962
    %v964 = vpop.f32.mrb[0].mxu0
    %965 = vmatprep.mubr.bf16.mxu0 %v780
    %966 = vmatmul.mubr.bf16.gmra.mrb[0].mxu0 %v779
    %v967 = vpop.f32.mrb[0].mxu0
    %v968 = vadd.f32 0.0, %v967
    %v969 = vpop.f32.mrb[0].mxu0
    %v970 = vpop.f32.mrb[0].mxu0
    %v971 = vadd.f32 0.0, %v970
    %v972 = vpop.f32.mrb[0].mxu0
    %973 = vdwg.mxu0
    %v974 = vpack.c.bf16 %v851, %v848
    %v975 = vpack.c.bf16 %v859, %v856
    %v976 = vpack.c.bf16 %v867, %v864
    %v977 = vpack.c.bf16 %v875, %v872
    %v978 = vpack.c.bf16 %v883, %v880
    %v979 = vpack.c.bf16 %v891, %v888
    %v980 = vpack.c.bf16 %v899, %v896
    %v981 = vpack.c.bf16 %v907, %v904
    %v982 = vpack.c.bf16 %v915, %v912
    %v983 = vpack.c.bf16 %v923, %v920
    %v984 = vpack.c.bf16 %v931, %v928
    %v985 = vpack.c.bf16 %v939, %v936
    %v986 = vpack.c.bf16 %v947, %v944
    %v987 = vpack.c.bf16 %v955, %v952
    %v988 = vpack.c.bf16 %v963, %v960
    %v989 = vpack.c.bf16 %v971, %v968
    %990 = vset.pattern.permute.xlu0 2
    %991 = vperm.xlu0 %990, %v189
    %v992 = vpop.permute.xlu0 %991
    %994 = vset.pattern.permute.xlu0 2
    %995 = vperm.xlu0 %994, %v190
    %v996 = vpop.permute.xlu0 %995
    %998 = vset.pattern.permute.xlu0 2
    %999 = vperm.xlu0 %998, %v191
    %v1000 = vpop.permute.xlu0 %999
    %1002 = vset.pattern.permute.xlu0 2
    %1003 = vperm.xlu0 %1002, %v192
    %v1004 = vpop.permute.xlu0 %1003
    %1006 = vset.pattern.permute.xlu0 2
    %1007 = vperm.xlu0 %1006, %v193
    %v1008 = vpop.permute.xlu0 %1007
    %1010 = vset.pattern.permute.xlu0 2
    %1011 = vperm.xlu0 %1010, %v194
    %v1012 = vpop.permute.xlu0 %1011
    %1014 = vset.pattern.permute.xlu0 2
    %1015 = vperm.xlu0 %1014, %v195
    %v1016 = vpop.permute.xlu0 %1015
    %1018 = vset.pattern.permute.xlu0 2
    %1019 = vperm.xlu0 %1018, %v196
    %v1020 = vpop.permute.xlu0 %1019
    %1022 = vset.pattern.permute.xlu0 2
    %1023 = vperm.xlu0 %1022, %v197
    %v1024 = vpop.permute.xlu0 %1023
    %1026 = vset.pattern.permute.xlu0 2
    %1027 = vperm.xlu0 %1026, %v198
    %v1028 = vpop.permute.xlu0 %1027
    %1030 = vset.pattern.permute.xlu0 2
    %1031 = vperm.xlu0 %1030, %v199
    %v1032 = vpop.permute.xlu0 %1031
    %1034 = vset.pattern.permute.xlu0 2
    %1035 = vperm.xlu0 %1034, %v200
    %v1036 = vpop.permute.xlu0 %1035
    %1038 = vset.pattern.permute.xlu0 2
    %1039 = vperm.xlu0 %1038, %v201
    %v1040 = vpop.permute.xlu0 %1039
    %1042 = vset.pattern.permute.xlu0 2
    %1043 = vperm.xlu0 %1042, %v202
    %v1044 = vpop.permute.xlu0 %1043
    %1046 = vset.pattern.permute.xlu0 2
    %1047 = vperm.xlu0 %1046, %v203
    %v1048 = vpop.permute.xlu0 %1047
    %1050 = vset.pattern.permute.xlu0 2
    %1051 = vperm.xlu0 %1050, %v204
    %v1052 = vpop.permute.xlu0 %1051
    %1054 = vset.pattern.permute.xlu0 2
    %1055 = vperm.xlu0 %1054, %v205
    %v1056 = vpop.permute.xlu0 %1055
    %1058 = vset.pattern.permute.xlu0 2
    %1059 = vperm.xlu0 %1058, %v206
    %v1060 = vpop.permute.xlu0 %1059
    %1062 = vset.pattern.permute.xlu0 2
    %1063 = vperm.xlu0 %1062, %v207
    %v1064 = vpop.permute.xlu0 %1063
    %1066 = vset.pattern.permute.xlu0 2
    %1067 = vperm.xlu0 %1066, %v208
    %v1068 = vpop.permute.xlu0 %1067
    %1070 = vset.pattern.permute.xlu0 2
    %1071 = vperm.xlu0 %1070, %v209
    %v1072 = vpop.permute.xlu0 %1071
    %1074 = vset.pattern.permute.xlu0 2
    %1075 = vperm.xlu0 %1074, %v210
    %v1076 = vpop.permute.xlu0 %1075
    %1078 = vset.pattern.permute.xlu0 2
    %1079 = vperm.xlu0 %1078, %v211
    %v1080 = vpop.permute.xlu0 %1079
    %1082 = vset.pattern.permute.xlu0 2
    %1083 = vperm.xlu0 %1082, %v212
    %v1084 = vpop.permute.xlu0 %1083
    %1086 = vset.pattern.permute.xlu0 2
    %1087 = vperm.xlu0 %1086, %v213
    %v1088 = vpop.permute.xlu0 %1087
    %1090 = vset.pattern.permute.xlu0 2
    %1091 = vperm.xlu0 %1090, %v214
    %v1092 = vpop.permute.xlu0 %1091
    %1094 = vset.pattern.permute.xlu0 2
    %1095 = vperm.xlu0 %1094, %v215
    %v1096 = vpop.permute.xlu0 %1095
    %1098 = vset.pattern.permute.xlu0 2
    %1099 = vperm.xlu0 %1098, %v216
    %v1100 = vpop.permute.xlu0 %1099
    %1102 = vset.pattern.permute.xlu0 2
    %1103 = vperm.xlu0 %1102, %v217
    %v1104 = vpop.permute.xlu0 %1103
    %1106 = vset.pattern.permute.xlu0 2
    %1107 = vperm.xlu0 %1106, %v218
    %v1108 = vpop.permute.xlu0 %1107
    %1110 = vset.pattern.permute.xlu0 2
    %1111 = vperm.xlu0 %1110, %v219
    %v1112 = vpop.permute.xlu0 %1111
    %1114 = vset.pattern.permute.xlu0 2
    %1115 = vperm.xlu0 %1114, %v220
    %v1116 = vpop.permute.xlu0 %1115
    %1118 = vmatprep.subr.bf16.mxu0 0
    %1119 = vmatpush1.bf16.msra.mxu0 %v133
    %1120 = vmatprep.subr.bf16.mxu0 0
    %1121 = vmatpush1.bf16.msra.mxu0 %v134
    %1122 = vmatprep.subr.bf16.mxu0 0
    %1123 = vmatpush1.bf16.msra.mxu0 %v135
    %1124 = vmatprep.subr.bf16.mxu0 0
    %1125 = vmatpush1.bf16.msra.mxu0 %v136
    %1126 = vmatprep.subr.bf16.mxu0 0
    %1127 = vmatpush1.bf16.msra.mxu0 %v137
    %1128 = vmatprep.subr.bf16.mxu0 0
    %1129 = vmatpush1.bf16.msra.mxu0 %v138
    %1130 = vmatprep.subr.bf16.mxu0 0
    %1131 = vmatpush1.bf16.msra.mxu0 %v139
    %1132 = vmatprep.subr.bf16.mxu0 0
    %1133 = vmatpush1.bf16.msra.mxu0 %v140
    %1134 = vmatprep.subr.bf16.mxu0 0
    %1135 = vmatpush1.bf16.msra.mxu0 0
    %1136 = vmatprep.subr.bf16.mxu0 0
    %1137 = vmatpush1.bf16.msra.mxu0 0
    %1138 = vmatprep.subr.bf16.mxu0 0
    %1139 = vmatpush1.bf16.msra.mxu0 0
    %1140 = vmatprep.subr.bf16.mxu0 0
    %1141 = vmatpush1.bf16.msra.mxu0 0
    %1142 = vmatprep.subr.bf16.mxu0 0
    %1143 = vmatpush1.bf16.msra.mxu0 0
    %1144 = vmatprep.subr.bf16.mxu0 0
    %1145 = vmatpush1.bf16.msra.mxu0 0
    %1146 = vmatprep.subr.bf16.mxu0 0
    %1147 = vmatpush1.bf16.msra.mxu0 0
    %1148 = vmatprep.subr.bf16.mxu0 0
    %1149 = vmatpush1.bf16.msra.mxu0 0
    %1150 = vmatprep.mubr.bf16.mxu0 0
    %1151 = vmatmul.mubr.bf16.gmra.mrb[0].mxu0 %v974
    %v1152 = vpop.f32.mrb[0].mxu0
    %v1153 = vadd.f32 %v992, %v1152
    %v1154 = vpop.f32.mrb[0].mxu0
    %v1155 = vpop.f32.mrb[0].mxu0
    %v1156 = vadd.f32 %v996, %v1155
    %v1157 = vpop.f32.mrb[0].mxu0
    %1158 = vmatprep.mubr.bf16.mxu0 0
    %1159 = vmatmul.mubr.bf16.gmra.mrb[0].mxu0 %v975
    %v1160 = vpop.f32.mrb[0].mxu0
    %v1161 = vadd.f32 %v1000, %v1160
    %v1162 = vpop.f32.mrb[0].mxu0
    %v1163 = vpop.f32.mrb[0].mxu0
    %v1164 = vadd.f32 %v1004, %v1163
    %v1165 = vpop.f32.mrb[0].mxu0
    %1166 = vmatprep.mubr.bf16.mxu0 0
    %1167 = vmatmul.mubr.bf16.gmra.mrb[0].mxu0 %v976
    %v1168 = vpop.f32.mrb[0].mxu0
    %v1169 = vadd.f32 %v1008, %v1168
    %v1170 = vpop.f32.mrb[0].mxu0
    %v1171 = vpop.f32.mrb[0].mxu0
    %v1172 = vadd.f32 %v1012, %v1171
    %v1173 = vpop.f32.mrb[0].mxu0
    %1174 = vmatprep.mubr.bf16.mxu0 0
    %1175 = vmatmul.mubr.bf16.gmra.mrb[0].mxu0 %v977
    %v1176 = vpop.f32.mrb[0].mxu0
    %v1177 = vadd.f32 %v1016, %v1176
    %v1178 = vpop.f32.mrb[0].mxu0
    %v1179 = vpop.f32.mrb[0].mxu0
    %v1180 = vadd.f32 %v1020, %v1179
    %v1181 = vpop.f32.mrb[0].mxu0
    %1182 = vmatprep.mubr.bf16.mxu0 0
    %1183 = vmatmul.mubr.bf16.gmra.mrb[0].mxu0 %v978
    %v1184 = vpop.f32.mrb[0].mxu0
    %v1185 = vadd.f32 %v1024, %v1184
    %v1186 = vpop.f32.mrb[0].mxu0
    %v1187 = vpop.f32.mrb[0].mxu0
    %v1188 = vadd.f32 %v1028, %v1187
    %v1189 = vpop.f32.mrb[0].mxu0
    %1190 = vmatprep.mubr.bf16.mxu0 0
    %1191 = vmatmul.mubr.bf16.gmra.mrb[0].mxu0 %v979
    %v1192 = vpop.f32.mrb[0].mxu0
    %v1193 = vadd.f32 %v1032, %v1192
    %v1194 = vpop.f32.mrb[0].mxu0
    %v1195 = vpop.f32.mrb[0].mxu0
    %v1196 = vadd.f32 %v1036, %v1195
    %v1197 = vpop.f32.mrb[0].mxu0
    %1198 = vmatprep.mubr.bf16.mxu0 0
    %1199 = vmatmul.mubr.bf16.gmra.mrb[0].mxu0 %v980
    %v1200 = vpop.f32.mrb[0].mxu0
    %v1201 = vadd.f32 %v1040, %v1200
    %v1202 = vpop.f32.mrb[0].mxu0
    %v1203 = vpop.f32.mrb[0].mxu0
    %v1204 = vadd.f32 %v1044, %v1203
    %v1205 = vpop.f32.mrb[0].mxu0
    %1206 = vmatprep.mubr.bf16.mxu0 0
    %1207 = vmatmul.mubr.bf16.gmra.mrb[0].mxu0 %v981
    %v1208 = vpop.f32.mrb[0].mxu0
    %v1209 = vadd.f32 %v1048, %v1208
    %v1210 = vpop.f32.mrb[0].mxu0
    %v1211 = vpop.f32.mrb[0].mxu0
    %v1212 = vadd.f32 %v1052, %v1211
    %v1213 = vpop.f32.mrb[0].mxu0
    %1214 = vmatprep.mubr.bf16.mxu0 0
    %1215 = vmatmul.mubr.bf16.gmra.mrb[0].mxu0 %v982
    %v1216 = vpop.f32.mrb[0].mxu0
    %v1217 = vadd.f32 %v1056, %v1216
    %v1218 = vpop.f32.mrb[0].mxu0
    %v1219 = vpop.f32.mrb[0].mxu0
    %v1220 = vadd.f32 %v1060, %v1219
    %v1221 = vpop.f32.mrb[0].mxu0
    %1222 = vmatprep.mubr.bf16.mxu0 0
    %1223 = vmatmul.mubr.bf16.gmra.mrb[0].mxu0 %v983
    %v1224 = vpop.f32.mrb[0].mxu0
    %v1225 = vadd.f32 %v1064, %v1224
    %v1226 = vpop.f32.mrb[0].mxu0
    %v1227 = vpop.f32.mrb[0].mxu0
    %v1228 = vadd.f32 %v1068, %v1227
    %v1229 = vpop.f32.mrb[0].mxu0
    %1230 = vmatprep.mubr.bf16.mxu0 0
    %1231 = vmatmul.mubr.bf16.gmra.mrb[0].mxu0 %v984
    %v1232 = vpop.f32.mrb[0].mxu0
    %v1233 = vadd.f32 %v1072, %v1232
    %v1234 = vpop.f32.mrb[0].mxu0
    %v1235 = vpop.f32.mrb[0].mxu0
    %v1236 = vadd.f32 %v1076, %v1235
    %v1237 = vpop.f32.mrb[0].mxu0
    %1238 = vmatprep.mubr.bf16.mxu0 0
    %1239 = vmatmul.mubr.bf16.gmra.mrb[0].mxu0 %v985
    %v1240 = vpop.f32.mrb[0].mxu0
    %v1241 = vadd.f32 %v1080, %v1240
    %v1242 = vpop.f32.mrb[0].mxu0
    %v1243 = vpop.f32.mrb[0].mxu0
    %v1244 = vadd.f32 %v1084, %v1243
    %v1245 = vpop.f32.mrb[0].mxu0
    %1246 = vmatprep.mubr.bf16.mxu0 0
    %1247 = vmatmul.mubr.bf16.gmra.mrb[0].mxu0 %v986
    %v1248 = vpop.f32.mrb[0].mxu0
    %v1249 = vadd.f32 %v1088, %v1248
    %v1250 = vpop.f32.mrb[0].mxu0
    %v1251 = vpop.f32.mrb[0].mxu0
    %v1252 = vadd.f32 %v1092, %v1251
    %v1253 = vpop.f32.mrb[0].mxu0
    %1254 = vmatprep.mubr.bf16.mxu0 0
    %1255 = vmatmul.mubr.bf16.gmra.mrb[0].mxu0 %v987
    %v1256 = vpop.f32.mrb[0].mxu0
    %v1257 = vadd.f32 %v1096, %v1256
    %v1258 = vpop.f32.mrb[0].mxu0
    %v1259 = vpop.f32.mrb[0].mxu0
    %v1260 = vadd.f32 %v1100, %v1259
    %v1261 = vpop.f32.mrb[0].mxu0
    %1262 = vmatprep.mubr.bf16.mxu0 0
    %1263 = vmatmul.mubr.bf16.gmra.mrb[0].mxu0 %v988
    %v1264 = vpop.f32.mrb[0].mxu0
    %v1265 = vadd.f32 %v1104, %v1264
    %v1266 = vpop.f32.mrb[0].mxu0
    %v1267 = vpop.f32.mrb[0].mxu0
    %v1268 = vadd.f32 %v1108, %v1267
    %v1269 = vpop.f32.mrb[0].mxu0
    %1270 = vmatprep.mubr.bf16.mxu0 0
    %1271 = vmatmul.mubr.bf16.gmra.mrb[0].mxu0 %v989
    %v1272 = vpop.f32.mrb[0].mxu0
    %v1273 = vadd.f32 %v1112, %v1272
    %v1274 = vpop.f32.mrb[0].mxu0
    %v1275 = vpop.f32.mrb[0].mxu0
    %v1276 = vadd.f32 %v1116, %v1275
    %v1277 = vpop.f32.mrb[0].mxu0
    %1278 = vdwg.mxu0
    %v1279 = vmax.f32 %v1153, 0.0
    %v1280 = vmax.f32 %v1156, 0.0
    %v1281 = vmax.f32 %v1161, 0.0
    %v1282 = vmax.f32 %v1164, 0.0
    %v1283 = vmax.f32 %v1169, 0.0
    %v1284 = vmax.f32 %v1172, 0.0
    %v1285 = vmax.f32 %v1177, 0.0
    %v1286 = vmax.f32 %v1180, 0.0
    %v1287 = vmax.f32 %v1185, 0.0
    %v1288 = vmax.f32 %v1188, 0.0
    %v1289 = vmax.f32 %v1193, 0.0
    %v1290 = vmax.f32 %v1196, 0.0
    %v1291 = vmax.f32 %v1201, 0.0
    %v1292 = vmax.f32 %v1204, 0.0
    %v1293 = vmax.f32 %v1209, 0.0
    %v1294 = vmax.f32 %v1212, 0.0
    %v1295 = vmax.f32 %v1217, 0.0
    %v1296 = vmax.f32 %v1220, 0.0
    %v1297 = vmax.f32 %v1225, 0.0
    %v1298 = vmax.f32 %v1228, 0.0
    %v1299 = vmax.f32 %v1233, 0.0
    %v1300 = vmax.f32 %v1236, 0.0
    %v1301 = vmax.f32 %v1241, 0.0
    %v1302 = vmax.f32 %v1244, 0.0
    %v1303 = vmax.f32 %v1249, 0.0
    %v1304 = vmax.f32 %v1252, 0.0
    %v1305 = vmax.f32 %v1257, 0.0
    %v1306 = vmax.f32 %v1260, 0.0
    %v1307 = vmax.f32 %v1265, 0.0
    %v1308 = vmax.f32 %v1268, 0.0
    %v1309 = vmax.f32 %v1273, 0.0
    %v1310 = vmax.f32 %v1276, 0.0
    %v1311 = vld [vmem:[%s4] sm:$0xff]
    %v1312 = vld [vmem:[%s4 + $0x8] sm:$0xff]
    %v1313 = vld [vmem:[%s4 + $0x10] sm:$0xff]
    %v1314 = vld [vmem:[%s4 + $0x18] sm:$0xff]
    %v1315 = vpack.c.bf16 %v1280, %v1279
    %v1316 = vpack.c.bf16 %v1282, %v1281
    %v1317 = vpack.c.bf16 %v1284, %v1283
    %v1318 = vpack.c.bf16 %v1286, %v1285
    %v1319 = vpack.c.bf16 %v1288, %v1287
    %v1320 = vpack.c.bf16 %v1290, %v1289
    %v1321 = vpack.c.bf16 %v1292, %v1291
    %v1322 = vpack.c.bf16 %v1294, %v1293
    %v1323 = vpack.c.bf16 %v1296, %v1295
    %v1324 = vpack.c.bf16 %v1298, %v1297
    %v1325 = vpack.c.bf16 %v1300, %v1299
    %v1326 = vpack.c.bf16 %v1302, %v1301
    %v1327 = vpack.c.bf16 %v1304, %v1303
    %v1328 = vpack.c.bf16 %v1306, %v1305
    %v1329 = vpack.c.bf16 %v1308, %v1307
    %v1330 = vpack.c.bf16 %v1310, %v1309
    %v1331 = vld [vmem:[%s5] sm:$0xff]
    %v1332 = vld [vmem:[%s5 + $0x8] sm:$0xff]
    %v1333 = vld [vmem:[%s5 + $0x10] sm:$0xff]
    %v1334 = vld [vmem:[%s5 + $0x18] sm:$0xff]
    %1336 = vset.pattern.permute.xlu0 3
    %1337 = vperm.xlu0 %1336, %v1331
    %v1338 = vpop.permute.xlu0 %1337
    %1341 = vset.pattern.permute.xlu0 3
    %1342 = vperm.xlu0 %1341, %v1332
    %v1343 = vpop.permute.xlu0 %1342
    %1346 = vset.pattern.permute.xlu0 3
    %1347 = vperm.xlu0 %1346, %v1333
    %v1348 = vpop.permute.xlu0 %1347
    %1351 = vset.pattern.permute.xlu0 3
    %1352 = vperm.xlu0 %1351, %v1334
    %v1353 = vpop.permute.xlu0 %1352
    %v1359 = vunpack.c.l.b16 %v1311
    %v1360 = vunpack.c.h.b16 %v1311
    %v1361 = vunpack.c.l.b16 %v1312
    %v1362 = vunpack.c.h.b16 %v1312
    %v1363 = vunpack.c.l.b16 %v1313
    %v1364 = vunpack.c.h.b16 %v1313
    %v1365 = vunpack.c.l.b16 %v1314
    %v1366 = vunpack.c.h.b16 %v1314
    %v1367 = vpack.c.b16 %v1361, %v1359
    %v1368 = vpack.c.b16 %v1362, %v1360
    %v1369 = vpack.c.b16 %v1365, %v1363
    %v1370 = vpack.c.b16 %v1366, %v1364
    %1375 = vmatprep.subr.bf16.mxu0 0
    %1376 = vmatpush1.bf16.msra.mxu0 %v1315
    %1377 = vmatprep.subr.bf16.mxu0 0
    %1378 = vmatpush1.bf16.msra.mxu0 %v1316
    %1379 = vmatprep.subr.bf16.mxu0 0
    %1380 = vmatpush1.bf16.msra.mxu0 %v1317
    %1381 = vmatprep.subr.bf16.mxu0 0
    %1382 = vmatpush1.bf16.msra.mxu0 %v1318
    %1383 = vmatprep.subr.bf16.mxu0 0
    %1384 = vmatpush1.bf16.msra.mxu0 %v1319
    %1385 = vmatprep.subr.bf16.mxu0 0
    %1386 = vmatpush1.bf16.msra.mxu0 %v1320
    %1387 = vmatprep.subr.bf16.mxu0 0
    %1388 = vmatpush1.bf16.msra.mxu0 %v1321
    %1389 = vmatprep.subr.bf16.mxu0 0
    %1390 = vmatpush1.bf16.msra.mxu0 %v1322
    %1391 = vmatprep.subr.bf16.mxu0 0
    %1392 = vmatpush1.bf16.msra.mxu0 %v1323
    %1393 = vmatprep.subr.bf16.mxu0 0
    %1394 = vmatpush1.bf16.msra.mxu0 %v1324
    %1395 = vmatprep.subr.bf16.mxu0 0
    %1396 = vmatpush1.bf16.msra.mxu0 %v1325
    %1397 = vmatprep.subr.bf16.mxu0 0
    %1398 = vmatpush1.bf16.msra.mxu0 %v1326
    %1399 = vmatprep.subr.bf16.mxu0 0
    %1400 = vmatpush1.bf16.msra.mxu0 %v1327
    %1401 = vmatprep.subr.bf16.mxu0 0
    %1402 = vmatpush1.bf16.msra.mxu0 %v1328
    %1403 = vmatprep.subr.bf16.mxu0 0
    %1404 = vmatpush1.bf16.msra.mxu0 %v1329
    %1405 = vmatprep.subr.bf16.mxu0 0
    %1406 = vmatpush1.bf16.msra.mxu0 %v1330
    %1407 = vmatprep.mubr.bf16.mxu0 %v1368
    %1408 = vmatmul.mubr.bf16.gmra.mrb[0].mxu0 %v1367
    %v1409 = vpop.f32.mrb[0].mxu0
    %v1410 = vadd.f32 %v1338, %v1409
    %v1411 = vpop.f32.mrb[0].mxu0
    %v1412 = vpop.f32.mrb[0].mxu0
    %v1413 = vadd.f32 %v1343, %v1412
    %v1414 = vpop.f32.mrb[0].mxu0
    %1415 = vmatprep.mubr.bf16.mxu0 %v1370
    %1416 = vmatmul.mubr.bf16.gmra.mrb[0].mxu0 %v1369
    %v1417 = vpop.f32.mrb[0].mxu0
    %v1418 = vadd.f32 %v1348, %v1417
    %v1419 = vpop.f32.mrb[0].mxu0
    %v1420 = vpop.f32.mrb[0].mxu0
    %v1421 = vadd.f32 %v1353, %v1420
    %v1422 = vpop.f32.mrb[0].mxu0
    %1423 = vdwg.mxu0
    %v1424 = vmin.f32 %v1418, 0.0
    %v1425 = vand.u32 2147483647, %v1418
    %v1426 = vsub.f32 0.0, %v1425
    %v1427 = vmul.f32 %v1426, 1.442695
    %v1428 = vpow.pop %v1427
    %v1429 = vadd.f32 %v1428, 1.0
    %v1430 = vlog2.pop %v1429
    %v1431 = vmul.f32 %v1430, 0.6931472
    %v1432 = vsub.f32 %v1424, %v1431
    %v1433 = vmin.f32 %v1421, 0.0
    %v1434 = vand.u32 2147483647, %v1421
    %v1435 = vsub.f32 0.0, %v1434
    %v1436 = vmul.f32 %v1435, 1.442695
    %v1437 = vpow.pop %v1436
    %v1438 = vadd.f32 %v1437, 1.0
    %v1439 = vlog2.pop %v1438
    %v1440 = vmul.f32 %v1439, 0.6931472
    %v1441 = vsub.f32 %v1433, %v1440
    %v1442 = vmul.f32 %v1432, 1.442695
    %v1443 = vpow.pop %v1442
    %v1444 = vmul.f32 %v1441, 1.442695
    %v1445 = vpow.pop %v1444
    %v1446 = vadd.f32 %v69, %v1410
    %v1447 = vmul.f32 %v1446, %v1443
    %v1448 = vadd.f32 %v83, %v1413
    %v1449 = vmul.f32 %v1448, %v1445
    %1450 = vst [vmem:[%s6] sm:$0xff] %v55
    %1451 = vst [vmem:[%s6 + $0x8] sm:$0xff] %v1447
    %1452 = vst [vmem:[%s6 + $0x10] sm:$0xff] %v1449
    %v1453 = vadd.f32 %v1432, %v1441
    %1454 = vst [vmem:[%s7] sm:$0xff] %v1453
    // Predicated region
    $region30: #{flow_step_forward.1} parent=1 // pred_check
      _
    $region31: #{flow_step_forward.1} parent=1 // pred_check_branch
      %1456 = sbr.rel (0) target = $region33
    $region32: #{flow_step_forward.1} parent=1 // pred_region
      _
    $region33: #{flow_step_forward.1} parent=1 // pred_fallthru
      _
    // Predicated region
    $region34: #{flow_step_forward.1} parent=1 // pred_check
      _
    $region35: #{flow_step_forward.1} parent=1 // pred_check_branch
      %1458 = sbr.rel (0) target = $region37
    $region36: #{flow_step_forward.1} parent=1 // pred_region
      _
    $region37: #{flow_step_forward.1} parent=1 // pred_fallthru
      _
    // Predicated region
    $region38: #{flow_step_forward.1} parent=1 // pred_check
      _
    $region39: #{flow_step_forward.1} parent=1 // pred_check_branch
      %1460 = sbr.rel (0) target = $region41
    $region40: #{flow_step_forward.1} parent=1 // pred_region
      _
    $region41: #{flow_step_forward.1} parent=1 // pred_fallthru
      _
    // Predicated region
    $region42: #{flow_step_forward.1} parent=1 // pred_check
      _
    $region43: #{flow_step_forward.1} parent=1 // pred_check_branch
      %1462 = sbr.rel (0) target = $region45
    $region44: #{flow_step_forward.1} parent=1 // pred_region
      _
    $region45: #{flow_step_forward.1} parent=1 // pred_fallthru
      _
    %1463 = vsyncpa [#allocation3], 1

</llo_original>
